<compile_context>
chip_gen: v6e
topology: v6e:2x2x1
jax: 0.10.0
libtpu: 0.0.40
codegen_flags: <defaults>
</compile_context>

<pallas_src>
import jax
import jax.numpy as jnp
from jax.experimental import pallas as pl
from jax.experimental.pallas import tpu as pltpu

LANE = 128
NEG = -1e30


def _round_up(x, m=LANE):
    return -(-x // m) * m


def make_caser_kernel(TB, L, V, LOW, HIGH, C0):
    """Kernel for one batch tile of TB rows."""

    def kernel(seq_ref, user_ref, tbl_ref, wc_ref, bias_ref, wfc_ref, out_ref):
        # ---- fused embedding gather: ONE one-hot @ block-diag [Q x L | P] ----
        # Combined id space: item at sequence slot l -> column l*V + id,
        # user -> column L*V + id.  Ids are assumed in-range (torch.nn.Embedding
        # would error on OOB ids anyway); OOB ids would alias a neighbour slot.
        K_OH = tbl_ref.shape[0]
        iota = jax.lax.broadcasted_iota(jnp.int32, (TB, K_OH), 1)
        seq_ids = seq_ref[...]                                   # (TB, L) int32
        hit = iota == (user_ref[...] + L * V)                    # (TB, K_OH)
        for l in range(L):
            hit = jnp.logical_or(hit, iota == (seq_ids[:, l:l + 1] + l * V))
        onehot = hit.astype(jnp.bfloat16)                        # exact 0/1

        # G: (TB, GW) f32.  cols [0, L*F)          = flat item embeddings
        #                   cols [C0+VD, C0+VD+F)  = user embedding
        #                   everything else        = exactly 0
        G = jnp.dot(onehot, tbl_ref[...], preferred_element_type=jnp.float32)
        Gb = G.astype(jnp.bfloat16)    # exact: entries are bf16 table values / 0

        bias = bias_ref[...]           # (L+2, HIGH) f32

        # ---- all convolutions: one K=GW matmul per sliding window ------------
        # Wc[t] is the host-side row-shifted packed weight; output columns are
        # [ conv_v (t=0 only) | pad | conv_h | pad ] on 128-lane boundaries.
        low = None
        high = None
        for t in range(L):
            r = jnp.dot(Gb, wc_ref[t], preferred_element_type=jnp.float32)
            # invalid kernel heights carry a -1e30 bias -> ReLU forces them to 0.
            h = jnp.maximum(r[:, LOW:] + bias[t:t + 1, :], 0.0)
            if t == 0:
                # conv_v (+ bias) plus the user embedding, already lane-placed.
                low = r[:, :LOW] + bias[L:L + 1, :LOW] + G[:, C0:C0 + LOW]
                high = h
            else:
                high = jnp.maximum(high, h)                      # max_pool1d over time

        # ---- fully connected (dropout == identity at inference) --------------
        # Two lane-aligned K=128 matmuls instead of a misaligned concatenate.
        out = (jnp.dot(low, wfc_ref[:LOW, :], preferred_element_type=jnp.float32)
               + jnp.dot(high, wfc_ref[LOW:, :], preferred_element_type=jnp.float32)
               + bias[L + 1:L + 2, :LANE])
        out_ref[...] = out

    return kernel


def _pick_block_b(B):
    """Batch tile: multiple of 8, >= 2 grid steps when possible (v7x has two
    TensorCores), capped at 512 to bound per-step VMEM."""
    if B <= 8:
        return B
    best = None
    for m in range(8, min(B // 2, 512) + 1, 8):
        if B % m == 0:
            best = m
    return best if best is not None else B


def caser_forward(user_id, seq, P, Q, wv_full, bv_vec, wh_full, bh_rows, wfc,
                  bfc_vec, block_b=None):
    """Caser forward pass.  Returns z of shape (B,) (== PyTorch z.squeeze())."""
    B, L = seq.shape
    num_users, F = P.shape
    num_items = Q.shape[0]
    d_prime = wv_full.shape[0]
    d = wh_full[0].shape[0]

    LF, HD, VD = L * F, L * d, d_prime * F
    EPAD = (2 * L - 1) * F                     # zero-padded item-slab width
    assert VD + F <= LANE, "TODO(synk): generalize low-slab packing when d_prime*F + F > 128"

    LOW = LANE                                 # conv_v (+ user-emb) segment width
    HIGH = _round_up(HD)                       # conv_h segment width
    # 128-aligned G column where the "low add" slice starts: the user embedding
    # sits at [C0 + VD, C0 + VD + F), which is (a) past every shifted conv
    # weight row and (b) exactly at the user lanes of the low slab.
    C0 = _round_up(max(LF, EPAD - VD))
    GW = C0 + LOW                              # gathered-slab width (multiple of 128)
    K_OH = _round_up(L * num_items + num_users)

    if block_b is None:
        block_b = _pick_block_b(B)
    assert B % block_b == 0, "batch must be divisible by the batch tile"

    f32 = jnp.float32

    # ---- block-diagonal gather table: [Q x L | P], already lane-placed -------
    tbl = jnp.zeros((K_OH, GW), f32)
    for l in range(L):
        tbl = tbl.at[l * num_items:(l + 1) * num_items, l * F:(l + 1) * F].set(Q)
    tbl = tbl.at[L * num_items:L * num_items + num_users,
                 C0 + VD:C0 + VD + F].set(P)

    # ---- packed + pre-shifted conv weights ------------------------------------
    # Horizontal conv of height i: rows k*F + f, columns (i-1)*d + c.
    wh_all = jnp.zeros((LF, HD), f32)
    for i in range(1, L + 1):
        w = wh_full[i - 1][:, 0].reshape(d, i * F).T           # (i*F, d)
        wh_all = wh_all.at[:i * F, (i - 1) * d:i * d].set(w)
    # Vertical conv expanded: [l*F + f, c*F + g] = wv[c, l] * (f == g).
    wv = wv_full[:, 0, :, 0]                                   # (d_prime, L)
    wv_exp = jnp.einsum("cl,fg->lfcg", wv,
                        jnp.eye(F, dtype=f32)).reshape(LF, VD)
    # Wc[t]: rows shifted by t*F so window t is dot(G, Wc[t]) with no slicing;
    # output columns [0:VD] = conv_v (only t=0), [LOW:LOW+HD] = conv_h.
    wc = jnp.zeros((L, GW, LOW + HIGH), f32)
    for t in range(L):
        wc = wc.at[t, t * F:t * F + LF, LOW:LOW + HD].set(wh_all)
    wc = wc.at[0, :LF, :VD].set(wv_exp)

    # ---- packed biases ---------------------------------------------------------
    # rows 0..L-1 : conv_h bias for window t, invalid kernel heights = -1e30
    # row  L      : conv_v bias (user-emb lanes = 0)
    # row  L+1    : fc bias at lane 0
    bh_flat = jnp.concatenate(bh_rows)                          # (HD,)
    bh_pad = jnp.concatenate([bh_flat, jnp.zeros((HIGH - HD,), f32)])
    col = jnp.arange(HIGH)
    bias_pack = jnp.zeros((L + 2, HIGH), f32)
    for t in range(L):
        bias_pack = bias_pack.at[t].set(jnp.where(col < (L - t) * d, bh_pad, NEG))
    bvu = jnp.zeros((HIGH,), f32).at[:VD].set(jnp.repeat(bv_vec, F))
    bias_pack = bias_pack.at[L].set(bvu)
    bias_pack = bias_pack.at[L + 1, 0].set(bfc_vec[0])

    # ---- fc weight, rows reordered to the slab layout, 128 output lanes -------
    wfc_pack = jnp.zeros((LOW + HIGH, LANE), f32)
    wfc_pack = wfc_pack.at[:VD, 0].set(wfc[0, :VD])                  # conv_v rows
    wfc_pack = wfc_pack.at[VD:VD + F, 0].set(wfc[0, VD + HD:])       # user-emb rows
    wfc_pack = wfc_pack.at[LOW:LOW + HD, 0].set(wfc[0, VD:VD + HD])  # conv_h rows

    kernel = make_caser_kernel(block_b, L, num_items, LOW, HIGH, C0)

    out = pl.pallas_call(
        kernel,
        out_shape=jax.ShapeDtypeStruct((B, LANE), f32),
        grid=(B // block_b,),
        in_specs=[
            pl.BlockSpec((block_b, L), lambda gb: (gb, 0)),           # item id tile
            pl.BlockSpec((block_b, 1), lambda gb: (gb, 0)),           # user id tile
            pl.BlockSpec((K_OH, GW), lambda gb: (0, 0)),              # gather table
            pl.BlockSpec((L, GW, LOW + HIGH), lambda gb: (0, 0, 0)),  # shifted conv weights
            pl.BlockSpec((L + 2, HIGH), lambda gb: (0, 0)),           # packed biases
            pl.BlockSpec((LOW + HIGH, LANE), lambda gb: (0, 0)),      # packed fc weight
        ],
        out_specs=pl.BlockSpec((block_b, LANE), lambda gb: (gb, 0)),
        compiler_params=pltpu.CompilerParams(
            dimension_semantics=("parallel",),
            vmem_limit_bytes=32 * 1024 * 1024,
        ),
    )(seq.astype(jnp.int32), user_id.astype(jnp.int32),
      tbl.astype(jnp.bfloat16), wc.astype(jnp.bfloat16), bias_pack, wfc_pack)

    return out[:, 0]   # lane 0 carries the fc output; matches z.squeeze()


if __name__ == "__main__":
    # Hyperparameters (module defaults, small shapes).
    num_factors = 16     # F
    num_users = 10
    num_items = 20
    L, d, d_prime = 5, 16, 4
    B = 2
    D_total = d_prime * num_factors + d * L + num_factors

    keys = iter(jax.random.split(jax.random.PRNGKey(0), 32))

    def rnd(shape, scale=0.1):
        return (scale * jax.random.normal(next(keys), shape)).astype(jnp.float32)

    # Deterministic synthetic parameters (shapes follow the PyTorch __init__).
    P = rnd((num_users, num_factors))                          # user embedding table
    Q = rnd((num_items, num_factors))                          # item embedding table
    wv_full = rnd((d_prime, 1, L, 1))                          # conv_v weight (NCHW)
    bv_vec = rnd((d_prime,))                                   # conv_v bias
    wh_full = [rnd((d, 1, i, num_factors)) for i in range(1, L + 1)]   # convs_h weights
    bh_rows = [rnd((d,)) for _ in range(L)]                    # convs_h biases
    wfc = rnd((1, D_total))                                    # fc weight
    bfc_vec = rnd((1,))                                        # fc bias

    seq = jax.random.randint(next(keys), (B, L), 0, num_items, dtype=jnp.int32)
    user_id = jax.random.randint(next(keys), (B, 1), 0, num_users, dtype=jnp.int32)

    z = caser_forward(user_id, seq, P, Q, wv_full, bv_vec, wh_full, bh_rows, wfc, bfc_vec)
    z = jax.block_until_ready(z)

    # Pure-JAX reference (same math as the PyTorch forward).  The kernel ships
    # the embedding tables / conv weights to the MXU in bf16, so the reference
    # uses the same bf16-rounded values (everything else f32) for a tight check.
    def bf16_round(x):
        return x.astype(jnp.bfloat16).astype(jnp.float32)

    def ref_forward():
        hi = jax.lax.Precision.HIGHEST
        Qr, Pr = bf16_round(Q), bf16_round(P)
        wvr = bf16_round(wv_full)[:, 0, :, 0]
        item_embs = jnp.take(Qr, seq, axis=0)                      # (B, L, F)
        user_emb = jnp.take(Pr, user_id[:, 0], axis=0)             # (B, F)
        out_v = jnp.einsum("blf,cl->bcf", item_embs, wvr,
                           precision=hi) + bv_vec[None, :, None]
        out_v = out_v.reshape(B, -1)
        out_hs = []
        for i in range(1, L + 1):
            W = bf16_round(wh_full[i - 1])[:, 0]                   # (d, i, F)
            hs = []
            for t in range(L - i + 1):
                hs.append(jnp.einsum("bkf,ckf->bc", item_embs[:, t:t + i, :], W,
                                     precision=hi) + bh_rows[i - 1])
            h = jax.nn.relu(jnp.stack(hs, axis=-1))                # (B, d, L-i+1)
            out_hs.append(jnp.max(h, axis=-1))                     # (B, d)
        out_h = jnp.concatenate(out_hs, axis=1)
        x = jnp.concatenate([out_v, out_h, user_emb], axis=1)
        return (jnp.dot(x, wfc.T, precision=hi) + bfc_vec)[:, 0]

    z_ref = jax.block_until_ready(ref_forward())
    if not bool(jnp.allclose(z, z_ref, atol=1e-3, rtol=1e-3)):
        raise AssertionError(f"mismatch: kernel={z}, ref={z_ref}")

    print("KERNEL_OK")
</pallas_src>

<mosaic_0001>
module attributes {stable_mosaic.version = 11 : i64} {
  func.func @kernel(%arg0: i32, %arg1: memref<2x5xi32, #tpu.memory_space<vmem>>, %arg2: memref<2x1xi32, #tpu.memory_space<vmem>>, %arg3: memref<128x256xbf16, #tpu.memory_space<vmem>>, %arg4: memref<5x256x256xbf16, #tpu.memory_space<vmem>>, %arg5: memref<7x128xf32, #tpu.memory_space<vmem>>, %arg6: memref<256x128xf32, #tpu.memory_space<vmem>>, %arg7: memref<2x128xf32, #tpu.memory_space<vmem>>) attributes {dimension_semantics = [#tpu.dimension_semantics<parallel>], iteration_bounds = array<i64: 1>, scalar_prefetch = 0 : i64, scratch_operands = 0 : i64, tpu.core_type = #tpu.core_type<tc>, window_params = [{transform_indices = @transform_0, window_bounds = array<i64: 2, 5>}, {transform_indices = @transform_1, window_bounds = array<i64: 2, 1>}, {pipeline_mode = #tpu.pipeline_mode<synchronous>, transform_indices = @transform_2, window_bounds = array<i64: 128, 256>}, {pipeline_mode = #tpu.pipeline_mode<synchronous>, transform_indices = @transform_3, window_bounds = array<i64: 5, 256, 256>}, {pipeline_mode = #tpu.pipeline_mode<synchronous>, transform_indices = @transform_4, window_bounds = array<i64: 7, 128>}, {pipeline_mode = #tpu.pipeline_mode<synchronous>, transform_indices = @transform_5, window_bounds = array<i64: 256, 128>}, {transform_indices = @transform_6, window_bounds = array<i64: 2, 128>}]} {
    %0 = tpu.iota {dimensions = array<i32: 1>} : vector<2x128xi32>
    %c0 = arith.constant 0 : index
    %c0_0 = arith.constant 0 : index
    %1 = vector.load %arg1[%c0, %c0_0] : memref<2x5xi32, #tpu.memory_space<vmem>>, vector<2x5xi32>
    %c0_1 = arith.constant 0 : index
    %c0_2 = arith.constant 0 : index
    %2 = vector.load %arg2[%c0_1, %c0_2] : memref<2x1xi32, #tpu.memory_space<vmem>>, vector<2x1xi32>
    %c100_i32 = arith.constant 100 : i32
    %3 = vector.broadcast %c100_i32 : i32 to vector<2x1xi32>
    %4 = arith.addi %2, %3 : vector<2x1xi32>
    %5 = vector.broadcast %4 : vector<2x1xi32> to vector<2x128xi32>
    %6 = arith.cmpi eq, %0, %5 : vector<2x128xi32>
    %7 = vector.extract_strided_slice %1 {offsets = [0, 0], sizes = [2, 1], strides = [1, 1]} : vector<2x5xi32> to vector<2x1xi32>
    %c0_i32 = arith.constant 0 : i32
    %8 = vector.broadcast %c0_i32 : i32 to vector<2x1xi32>
    %9 = arith.addi %7, %8 : vector<2x1xi32>
    %10 = vector.broadcast %9 : vector<2x1xi32> to vector<2x128xi32>
    %11 = arith.cmpi eq, %0, %10 : vector<2x128xi32>
    %12 = arith.ori %6, %11 : vector<2x128xi1>
    %13 = vector.extract_strided_slice %1 {offsets = [0, 1], sizes = [2, 1], strides = [1, 1]} : vector<2x5xi32> to vector<2x1xi32>
    %c20_i32 = arith.constant 20 : i32
    %14 = vector.broadcast %c20_i32 : i32 to vector<2x1xi32>
    %15 = arith.addi %13, %14 : vector<2x1xi32>
    %16 = vector.broadcast %15 : vector<2x1xi32> to vector<2x128xi32>
    %17 = arith.cmpi eq, %0, %16 : vector<2x128xi32>
    %18 = arith.ori %12, %17 : vector<2x128xi1>
    %19 = vector.extract_strided_slice %1 {offsets = [0, 2], sizes = [2, 1], strides = [1, 1]} : vector<2x5xi32> to vector<2x1xi32>
    %c40_i32 = arith.constant 40 : i32
    %20 = vector.broadcast %c40_i32 : i32 to vector<2x1xi32>
    %21 = arith.addi %19, %20 : vector<2x1xi32>
    %22 = vector.broadcast %21 : vector<2x1xi32> to vector<2x128xi32>
    %23 = arith.cmpi eq, %0, %22 : vector<2x128xi32>
    %24 = arith.ori %18, %23 : vector<2x128xi1>
    %25 = vector.extract_strided_slice %1 {offsets = [0, 3], sizes = [2, 1], strides = [1, 1]} : vector<2x5xi32> to vector<2x1xi32>
    %c60_i32 = arith.constant 60 : i32
    %26 = vector.broadcast %c60_i32 : i32 to vector<2x1xi32>
    %27 = arith.addi %25, %26 : vector<2x1xi32>
    %28 = vector.broadcast %27 : vector<2x1xi32> to vector<2x128xi32>
    %29 = arith.cmpi eq, %0, %28 : vector<2x128xi32>
    %30 = arith.ori %24, %29 : vector<2x128xi1>
    %31 = vector.extract_strided_slice %1 {offsets = [0, 4], sizes = [2, 1], strides = [1, 1]} : vector<2x5xi32> to vector<2x1xi32>
    %c80_i32 = arith.constant 80 : i32
    %32 = vector.broadcast %c80_i32 : i32 to vector<2x1xi32>
    %33 = arith.addi %31, %32 : vector<2x1xi32>
    %34 = vector.broadcast %33 : vector<2x1xi32> to vector<2x128xi32>
    %35 = arith.cmpi eq, %0, %34 : vector<2x128xi32>
    %36 = arith.ori %30, %35 : vector<2x128xi1>
    %37 = arith.extui %36 : vector<2x128xi1> to vector<2x128xi32>
    %38 = arith.sitofp %37 : vector<2x128xi32> to vector<2x128xf32>
    %39 = arith.truncf %38 : vector<2x128xf32> to vector<2x128xbf16>
    %c0_3 = arith.constant 0 : index
    %c0_4 = arith.constant 0 : index
    %40 = vector.load %arg3[%c0_3, %c0_4] : memref<128x256xbf16, #tpu.memory_space<vmem>>, vector<128x256xbf16>
    %cst = arith.constant dense<0.000000e+00> : vector<2x256xf32>
    %41 = tpu.matmul %39, %40, %cst {dimension_numbers = #tpu.dot_dimension_numbers<[1], [0], [0], [1], [0, 0, 1, 1], [], []>} : vector<2x128xbf16>, vector<128x256xbf16>, vector<2x256xf32> -> vector<2x256xf32>
    %42 = arith.truncf %41 : vector<2x256xf32> to vector<2x256xbf16>
    %c0_5 = arith.constant 0 : index
    %c0_6 = arith.constant 0 : index
    %43 = vector.load %arg5[%c0_5, %c0_6] : memref<7x128xf32, #tpu.memory_space<vmem>>, vector<7x128xf32>
    %c0_7 = arith.constant 0 : index
    %c0_8 = arith.constant 0 : index
    %c0_9 = arith.constant 0 : index
    %44 = vector.load %arg4[%c0_7, %c0_8, %c0_9] : memref<5x256x256xbf16, #tpu.memory_space<vmem>>, vector<1x256x256xbf16>
    %45 = vector.shape_cast %44 : vector<1x256x256xbf16> to vector<256x256xbf16>
    %cst_10 = arith.constant dense<0.000000e+00> : vector<2x256xf32>
    %46 = tpu.matmul %42, %45, %cst_10 {dimension_numbers = #tpu.dot_dimension_numbers<[1], [0], [0], [1], [0, 0, 1, 1], [], []>} : vector<2x256xbf16>, vector<256x256xbf16>, vector<2x256xf32> -> vector<2x256xf32>
    %47 = vector.extract_strided_slice %46 {offsets = [0, 128], sizes = [2, 128], strides = [1, 1]} : vector<2x256xf32> to vector<2x128xf32>
    %48 = vector.extract_strided_slice %43 {offsets = [0, 0], sizes = [1, 128], strides = [1, 1]} : vector<7x128xf32> to vector<1x128xf32>
    %49 = vector.broadcast %48 : vector<1x128xf32> to vector<2x128xf32>
    %50 = arith.addf %47, %49 : vector<2x128xf32>
    %cst_11 = arith.constant 0.000000e+00 : f32
    %51 = vector.broadcast %cst_11 : f32 to vector<2x128xf32>
    %52 = arith.maximumf %50, %51 : vector<2x128xf32>
    %53 = vector.extract_strided_slice %46 {offsets = [0, 0], sizes = [2, 128], strides = [1, 1]} : vector<2x256xf32> to vector<2x128xf32>
    %54 = vector.extract_strided_slice %43 {offsets = [5, 0], sizes = [1, 128], strides = [1, 1]} : vector<7x128xf32> to vector<1x128xf32>
    %55 = vector.broadcast %54 : vector<1x128xf32> to vector<2x128xf32>
    %56 = arith.addf %53, %55 : vector<2x128xf32>
    %57 = vector.extract_strided_slice %41 {offsets = [0, 128], sizes = [2, 128], strides = [1, 1]} : vector<2x256xf32> to vector<2x128xf32>
    %58 = arith.addf %56, %57 : vector<2x128xf32>
    %c1 = arith.constant 1 : index
    %c0_12 = arith.constant 0 : index
    %c0_13 = arith.constant 0 : index
    %59 = vector.load %arg4[%c1, %c0_12, %c0_13] : memref<5x256x256xbf16, #tpu.memory_space<vmem>>, vector<1x256x256xbf16>
    %60 = vector.shape_cast %59 : vector<1x256x256xbf16> to vector<256x256xbf16>
    %cst_14 = arith.constant dense<0.000000e+00> : vector<2x256xf32>
    %61 = tpu.matmul %42, %60, %cst_14 {dimension_numbers = #tpu.dot_dimension_numbers<[1], [0], [0], [1], [0, 0, 1, 1], [], []>} : vector<2x256xbf16>, vector<256x256xbf16>, vector<2x256xf32> -> vector<2x256xf32>
    %62 = vector.extract_strided_slice %61 {offsets = [0, 128], sizes = [2, 128], strides = [1, 1]} : vector<2x256xf32> to vector<2x128xf32>
    %63 = vector.extract_strided_slice %43 {offsets = [1, 0], sizes = [1, 128], strides = [1, 1]} : vector<7x128xf32> to vector<1x128xf32>
    %64 = vector.broadcast %63 : vector<1x128xf32> to vector<2x128xf32>
    %65 = arith.addf %62, %64 : vector<2x128xf32>
    %cst_15 = arith.constant 0.000000e+00 : f32
    %66 = vector.broadcast %cst_15 : f32 to vector<2x128xf32>
    %67 = arith.maximumf %65, %66 : vector<2x128xf32>
    %68 = arith.maximumf %52, %67 : vector<2x128xf32>
    %c2 = arith.constant 2 : index
    %c0_16 = arith.constant 0 : index
    %c0_17 = arith.constant 0 : index
    %69 = vector.load %arg4[%c2, %c0_16, %c0_17] : memref<5x256x256xbf16, #tpu.memory_space<vmem>>, vector<1x256x256xbf16>
    %70 = vector.shape_cast %69 : vector<1x256x256xbf16> to vector<256x256xbf16>
    %cst_18 = arith.constant dense<0.000000e+00> : vector<2x256xf32>
    %71 = tpu.matmul %42, %70, %cst_18 {dimension_numbers = #tpu.dot_dimension_numbers<[1], [0], [0], [1], [0, 0, 1, 1], [], []>} : vector<2x256xbf16>, vector<256x256xbf16>, vector<2x256xf32> -> vector<2x256xf32>
    %72 = vector.extract_strided_slice %71 {offsets = [0, 128], sizes = [2, 128], strides = [1, 1]} : vector<2x256xf32> to vector<2x128xf32>
    %73 = vector.extract_strided_slice %43 {offsets = [2, 0], sizes = [1, 128], strides = [1, 1]} : vector<7x128xf32> to vector<1x128xf32>
    %74 = vector.broadcast %73 : vector<1x128xf32> to vector<2x128xf32>
    %75 = arith.addf %72, %74 : vector<2x128xf32>
    %cst_19 = arith.constant 0.000000e+00 : f32
    %76 = vector.broadcast %cst_19 : f32 to vector<2x128xf32>
    %77 = arith.maximumf %75, %76 : vector<2x128xf32>
    %78 = arith.maximumf %68, %77 : vector<2x128xf32>
    %c3 = arith.constant 3 : index
    %c0_20 = arith.constant 0 : index
    %c0_21 = arith.constant 0 : index
    %79 = vector.load %arg4[%c3, %c0_20, %c0_21] : memref<5x256x256xbf16, #tpu.memory_space<vmem>>, vector<1x256x256xbf16>
    %80 = vector.shape_cast %79 : vector<1x256x256xbf16> to vector<256x256xbf16>
    %cst_22 = arith.constant dense<0.000000e+00> : vector<2x256xf32>
    %81 = tpu.matmul %42, %80, %cst_22 {dimension_numbers = #tpu.dot_dimension_numbers<[1], [0], [0], [1], [0, 0, 1, 1], [], []>} : vector<2x256xbf16>, vector<256x256xbf16>, vector<2x256xf32> -> vector<2x256xf32>
    %82 = vector.extract_strided_slice %81 {offsets = [0, 128], sizes = [2, 128], strides = [1, 1]} : vector<2x256xf32> to vector<2x128xf32>
    %83 = vector.extract_strided_slice %43 {offsets = [3, 0], sizes = [1, 128], strides = [1, 1]} : vector<7x128xf32> to vector<1x128xf32>
    %84 = vector.broadcast %83 : vector<1x128xf32> to vector<2x128xf32>
    %85 = arith.addf %82, %84 : vector<2x128xf32>
    %cst_23 = arith.constant 0.000000e+00 : f32
    %86 = vector.broadcast %cst_23 : f32 to vector<2x128xf32>
    %87 = arith.maximumf %85, %86 : vector<2x128xf32>
    %88 = arith.maximumf %78, %87 : vector<2x128xf32>
    %c4 = arith.constant 4 : index
    %c0_24 = arith.constant 0 : index
    %c0_25 = arith.constant 0 : index
    %89 = vector.load %arg4[%c4, %c0_24, %c0_25] : memref<5x256x256xbf16, #tpu.memory_space<vmem>>, vector<1x256x256xbf16>
    %90 = vector.shape_cast %89 : vector<1x256x256xbf16> to vector<256x256xbf16>
    %cst_26 = arith.constant dense<0.000000e+00> : vector<2x256xf32>
    %91 = tpu.matmul %42, %90, %cst_26 {dimension_numbers = #tpu.dot_dimension_numbers<[1], [0], [0], [1], [0, 0, 1, 1], [], []>} : vector<2x256xbf16>, vector<256x256xbf16>, vector<2x256xf32> -> vector<2x256xf32>
    %92 = vector.extract_strided_slice %91 {offsets = [0, 128], sizes = [2, 128], strides = [1, 1]} : vector<2x256xf32> to vector<2x128xf32>
    %93 = vector.extract_strided_slice %43 {offsets = [4, 0], sizes = [1, 128], strides = [1, 1]} : vector<7x128xf32> to vector<1x128xf32>
    %94 = vector.broadcast %93 : vector<1x128xf32> to vector<2x128xf32>
    %95 = arith.addf %92, %94 : vector<2x128xf32>
    %cst_27 = arith.constant 0.000000e+00 : f32
    %96 = vector.broadcast %cst_27 : f32 to vector<2x128xf32>
    %97 = arith.maximumf %95, %96 : vector<2x128xf32>
    %98 = arith.maximumf %88, %97 : vector<2x128xf32>
    %c0_28 = arith.constant 0 : index
    %c0_29 = arith.constant 0 : index
    %99 = vector.load %arg6[%c0_28, %c0_29] : memref<256x128xf32, #tpu.memory_space<vmem>>, vector<128x128xf32>
    %cst_30 = arith.constant dense<0.000000e+00> : vector<2x128xf32>
    %100 = tpu.matmul %58, %99, %cst_30 {dimension_numbers = #tpu.dot_dimension_numbers<[1], [0], [0], [1], [0, 0, 1, 1], [], []>} : vector<2x128xf32>, vector<128x128xf32>, vector<2x128xf32> -> vector<2x128xf32>
    %c128 = arith.constant 128 : index
    %c0_31 = arith.constant 0 : index
    %101 = vector.load %arg6[%c128, %c0_31] : memref<256x128xf32, #tpu.memory_space<vmem>>, vector<128x128xf32>
    %cst_32 = arith.constant dense<0.000000e+00> : vector<2x128xf32>
    %102 = tpu.matmul %98, %101, %cst_32 {dimension_numbers = #tpu.dot_dimension_numbers<[1], [0], [0], [1], [0, 0, 1, 1], [], []>} : vector<2x128xf32>, vector<128x128xf32>, vector<2x128xf32> -> vector<2x128xf32>
    %103 = arith.addf %100, %102 : vector<2x128xf32>
    %104 = vector.extract_strided_slice %43 {offsets = [6, 0], sizes = [1, 128], strides = [1, 1]} : vector<7x128xf32> to vector<1x128xf32>
    %105 = vector.broadcast %104 : vector<1x128xf32> to vector<2x128xf32>
    %106 = arith.addf %103, %105 : vector<2x128xf32>
    %c0_33 = arith.constant 0 : index
    %c0_34 = arith.constant 0 : index
    %107 = vector.load %arg7[%c0_33, %c0_34] : memref<2x128xf32, #tpu.memory_space<vmem>>, vector<2x128xf32>
    tpu.vector_store %arg7[%c0_33, %c0_34], %106 {strides = array<i32>} : memref<2x128xf32, #tpu.memory_space<vmem>>, vector<2x128xf32>,
    return
  }
  func.func @transform_0(%arg0: i32) -> (i32, i32) {
    %c0_i32 = arith.constant 0 : i32
    %c0_i32_0 = arith.constant 0 : i32
    return %arg0, %c0_i32 : i32, i32
  }
  func.func @transform_1(%arg0: i32) -> (i32, i32) {
    %c0_i32 = arith.constant 0 : i32
    %c0_i32_0 = arith.constant 0 : i32
    return %arg0, %c0_i32 : i32, i32
  }
  func.func @transform_2(%arg0: i32) -> (i32, i32) {
    %c0_i32 = arith.constant 0 : i32
    %c0_i32_0 = arith.constant 0 : i32
    %c0_i32_1 = arith.constant 0 : i32
    return %c0_i32, %c0_i32_0 : i32, i32
  }
  func.func @transform_3(%arg0: i32) -> (i32, i32, i32) {
    %c0_i32 = arith.constant 0 : i32
    %c0_i32_0 = arith.constant 0 : i32
    %c0_i32_1 = arith.constant 0 : i32
    %c0_i32_2 = arith.constant 0 : i32
    return %c0_i32, %c0_i32_0, %c0_i32_1 : i32, i32, i32
  }
  func.func @transform_4(%arg0: i32) -> (i32, i32) {
    %c0_i32 = arith.constant 0 : i32
    %c0_i32_0 = arith.constant 0 : i32
    %c0_i32_1 = arith.constant 0 : i32
    return %c0_i32, %c0_i32_0 : i32, i32
  }
  func.func @transform_5(%arg0: i32) -> (i32, i32) {
    %c0_i32 = arith.constant 0 : i32
    %c0_i32_0 = arith.constant 0 : i32
    %c0_i32_1 = arith.constant 0 : i32
    return %c0_i32, %c0_i32_0 : i32, i32
  }
  func.func @transform_6(%arg0: i32) -> (i32, i32) {
    %c0_i32 = arith.constant 0 : i32
    %c0_i32_0 = arith.constant 0 : i32
    return %arg0, %c0_i32 : i32, i32
  }
}

</mosaic_0001>

<llo_original>
// kernel: tpu_custom_call.1
$region0: #{tpu_custom_call.1}
  #allocation0 [shape = 'u32[]', space=smem, size = 0x4, offset = 0x4, fixed_abs, tag = 'smem constant byte address 0x4 - core index']
  #allocation1 [shape = 'u32[144,128]{1,0:T(1,128)}', space=vmem, size = 0x12000, scoped, tag = 'internal scratch']
  %s0 = inlined_call_operand.vmem [shape: s32[2,5], index: 0, kind: input, shape index: {}]
  %s1 = inlined_call_operand.vmem [shape: s32[2,1], index: 1, kind: input, shape index: {}]
  %s2 = inlined_call_operand.hbm [shape: bf16[128,256], index: 2, kind: input, shape index: {}]
  %s3 = inlined_call_operand.hbm [shape: bf16[5,256,256], index: 3, kind: input, shape index: {}]
  %s4 = inlined_call_operand.vmem [shape: f32[7,128], index: 4, kind: input, shape index: {}]
  %s5 = inlined_call_operand.hbm [shape: f32[256,128], index: 5, kind: input, shape index: {}]
  %s6 = inlined_call_operand.hbm [shape: f32[2,128], index: 6, kind: output, shape index: {}]
  %s7 = sld [smem:[#allocation0]]
  $region46: #{tpu_custom_call.1} parent=0
    _
  %s9 = ssub.s32 1, %s7
  %s10 = scalar_select 0, %s9, %s7
  $region1: #{tpu_custom_call.1} parent=0
    #allocation2 [shape = 'u8[65536]{0}', space=vmem, size = 0x10000, scoped, tag = 'input window, operand 2, single buffered']
    #allocation3 [shape = 's32[1]{0}', space=sflag, size = 0x4, scoped, tag = 'scoped memory for tpu_custom_call.1']
    #allocation4 [shape = 's32[1]{0}', space=sflag, size = 0x4, scoped, tag = 'scoped memory for tpu_custom_call.1']
    #allocation5 [shape = 'u8[655360]{0}', space=vmem, size = 0xa0000, scoped, tag = 'input window, operand 3, single buffered']
    #allocation6 [shape = 's32[1]{0}', space=sflag, size = 0x4, scoped, tag = 'scoped memory for tpu_custom_call.1']
    #allocation7 [shape = 'u8[131072]{0}', space=vmem, size = 0x20000, scoped, tag = 'input window, operand 5, single buffered']
    #allocation8 [shape = 'u8[1024]{0}', space=vmem, size = 0x400, scoped, tag = 'output window, operand 0, single buffered']
    %11 = vsyncpa [#allocation3], 0
    %12 = vsyncpa [#allocation6], 0
    %13 = vsyncpa [#allocation4], 0
    // Predicated region
    $region2: #{tpu_custom_call.1} parent=1 // pred_check
      _
    $region3: #{tpu_custom_call.1} parent=1 // pred_check_branch
      %15 = sbr.rel (0) target = $region5
    $region4: #{tpu_custom_call.1} parent=1 // pred_region
      _
    $region5: #{tpu_custom_call.1} parent=1 // pred_fallthru
      _
    // Predicated region
    $region6: #{tpu_custom_call.1} parent=1 // pred_check
      _
    $region7: #{tpu_custom_call.1} parent=1 // pred_check_branch
      %17 = sbr.rel (0) target = $region9
    $region8: #{tpu_custom_call.1} parent=1 // pred_region
      _
    $region9: #{tpu_custom_call.1} parent=1 // pred_fallthru
      _
    // Predicated region
    $region10: #{tpu_custom_call.1} parent=1 // pred_check
      _
    $region11: #{tpu_custom_call.1} parent=1 // pred_check_branch
      %19 = sbr.rel (0) target = $region13
    $region12: #{tpu_custom_call.1} parent=1 // pred_region
      %s21 = ssub.s32 2048, 2048
      %22 = vsyncadd [#allocation3], %s21
      %s23 = sshll.u32 [#allocation2], 4
      %s24 = int_to_ptr.vmem [resolvable:$true] %s23
      %29 = dma.hbm_to_vmem [thread:$0]  %s2, 2048, %s24, [#allocation3], 128, 128, 8
    $region13: #{tpu_custom_call.1} parent=1 // pred_fallthru
      _
    // Predicated region
    $region14: #{tpu_custom_call.1} parent=1 // pred_check
      _
    $region15: #{tpu_custom_call.1} parent=1 // pred_check_branch
      %31 = sbr.rel (0) target = $region17
    $region16: #{tpu_custom_call.1} parent=1 // pred_region
      %s33 = ssub.s32 20480, 20480
      %34 = vsyncadd [#allocation6], %s33
      %s35 = sshll.u32 [#allocation5], 4
      %s36 = int_to_ptr.vmem [resolvable:$true] %s35
      %41 = dma.hbm_to_vmem [thread:$0]  %s3, 20480, %s36, [#allocation6], 128, 128, 8
    $region17: #{tpu_custom_call.1} parent=1 // pred_fallthru
      _
    // Predicated region
    $region18: #{tpu_custom_call.1} parent=1 // pred_check
      _
    $region19: #{tpu_custom_call.1} parent=1 // pred_check_branch
      %43 = sbr.rel (0) target = $region21
    $region20: #{tpu_custom_call.1} parent=1 // pred_region
      _
    $region21: #{tpu_custom_call.1} parent=1 // pred_fallthru
      _
    // Predicated region
    $region22: #{tpu_custom_call.1} parent=1 // pred_check
      _
    $region23: #{tpu_custom_call.1} parent=1 // pred_check_branch
      %45 = sbr.rel (0) target = $region25
    $region24: #{tpu_custom_call.1} parent=1 // pred_region
      %s47 = ssub.s32 4096, 4096
      %48 = vsyncadd [#allocation6], %s47
      %s49 = sshll.u32 [#allocation7], 4
      %s50 = int_to_ptr.vmem [resolvable:$true] %s49
      %55 = dma.hbm_to_vmem [thread:$0]  %s5, 4096, %s50, [#allocation6], 128, 128, 8
    $region25: #{tpu_custom_call.1} parent=1 // pred_fallthru
      _
    // Predicated region
    $region26: #{tpu_custom_call.1} parent=1 // pred_check
      _
    $region27: #{tpu_custom_call.1} parent=1 // pred_check_branch
      %57 = sbr.rel (0) target = $region29
    $region28: #{tpu_custom_call.1} parent=1 // pred_region
      %58 = dma.done [#allocation3], 2048
    $region29: #{tpu_custom_call.1} parent=1 // pred_fallthru
      _
    // Predicated region
    $region30: #{tpu_custom_call.1} parent=1 // pred_check
      _
    $region31: #{tpu_custom_call.1} parent=1 // pred_check_branch
      %60 = sbr.rel (0) target = $region33
    $region32: #{tpu_custom_call.1} parent=1 // pred_region
      %61 = dma.done [#allocation6], 20480
    $region33: #{tpu_custom_call.1} parent=1 // pred_fallthru
      _
    // Predicated region
    $region34: #{tpu_custom_call.1} parent=1 // pred_check
      _
    $region35: #{tpu_custom_call.1} parent=1 // pred_check_branch
      %63 = sbr.rel (0) target = $region37
    $region36: #{tpu_custom_call.1} parent=1 // pred_region
      %64 = dma.done [#allocation6], 4096
    $region37: #{tpu_custom_call.1} parent=1 // pred_fallthru
      _
    %v66 = vlaneseq
    %v67 = vand.u32 %v66, 127
    %v68 = vld [vmem:[%s0] sm:$0x3]
    %v69 = vld [vmem:[%s1] sm:$0x3]
    %v70 = vadd.s32 %v69, 100
    %71 = vset.pattern.permute.xlu0 0
    %72 = vperm.xlu0 %71, %v70
    %v73 = vpop.permute.xlu0 %72
    %vm74 = vcmp.eq.s32.totalorder %v67, %v73
    %75 = vset.pattern.permute.xlu0 0
    %76 = vperm.xlu0 %75, %v68
    %v77 = vpop.permute.xlu0 %76
    %vm78 = vcmp.eq.s32.totalorder %v67, %v77
    %vm79 = vmor %vm74, %vm78
    %v80 = vadd.s32 %v68, 20
    %81 = vset.pattern.permute.xlu0 1
    %82 = vperm.xlu0 %81, %v80
    %v83 = vpop.permute.xlu0 %82
    %vm84 = vcmp.eq.s32.totalorder %v67, %v83
    %vm85 = vmor %vm79, %vm84
    %v86 = vadd.s32 %v68, 40
    %87 = vset.pattern.permute.xlu0 2
    %88 = vperm.xlu0 %87, %v86
    %v89 = vpop.permute.xlu0 %88
    %vm90 = vcmp.eq.s32.totalorder %v67, %v89
    %vm91 = vmor %vm85, %vm90
    %v92 = vadd.s32 %v68, 60
    %93 = vset.pattern.permute.xlu0 3
    %94 = vperm.xlu0 %93, %v92
    %v95 = vpop.permute.xlu0 %94
    %vm96 = vcmp.eq.s32.totalorder %v67, %v95
    %vm97 = vmor %vm91, %vm96
    %v98 = vadd.s32 %v68, 80
    %99 = vset.pattern.permute.xlu0 4
    %100 = vperm.xlu0 %99, %v98
    %v101 = vpop.permute.xlu0 %100
    %vm102 = vcmp.eq.s32.totalorder %v67, %v101
    %vm103 = vmor %vm97, %vm102
    %v104 = vsel %vm103, 1, 0
    %v105 = vcvt.s32.f32 %v104
    %v106 = vpack.c.bf16 %v105, %v105
    %v107 = vld [vmem:[#allocation2] sm:$0xff]
    %v108 = vld [vmem:[#allocation2 + $0x8] sm:$0xff]
    %v109 = vld [vmem:[#allocation2 + $0x10] sm:$0xff]
    %v110 = vld [vmem:[#allocation2 + $0x18] sm:$0xff]
    %v111 = vld [vmem:[#allocation2 + $0x20] sm:$0xff]
    %v112 = vld [vmem:[#allocation2 + $0x28] sm:$0xff]
    %v113 = vld [vmem:[#allocation2 + $0x30] sm:$0xff]
    %v114 = vld [vmem:[#allocation2 + $0x38] sm:$0xff]
    %v115 = vld [vmem:[#allocation2 + $0x40] sm:$0xff]
    %v116 = vld [vmem:[#allocation2 + $0x48] sm:$0xff]
    %v117 = vld [vmem:[#allocation2 + $0x50] sm:$0xff]
    %v118 = vld [vmem:[#allocation2 + $0x58] sm:$0xff]
    %v119 = vld [vmem:[#allocation2 + $0x60] sm:$0xff]
    %v120 = vld [vmem:[#allocation2 + $0x68] sm:$0xff]
    %v121 = vld [vmem:[#allocation2 + $0x70] sm:$0xff]
    %v122 = vld [vmem:[#allocation2 + $0x78] sm:$0xff]
    %v139 = vunpack.c.l.b16 %v107
    %v140 = vunpack.c.h.b16 %v107
    %v141 = vunpack.c.l.b16 %v108
    %v142 = vunpack.c.h.b16 %v108
    %v143 = vunpack.c.l.b16 %v109
    %v144 = vunpack.c.h.b16 %v109
    %v145 = vunpack.c.l.b16 %v110
    %v146 = vunpack.c.h.b16 %v110
    %v147 = vunpack.c.l.b16 %v111
    %v148 = vunpack.c.h.b16 %v111
    %v149 = vunpack.c.l.b16 %v112
    %v150 = vunpack.c.h.b16 %v112
    %v151 = vunpack.c.l.b16 %v113
    %v152 = vunpack.c.h.b16 %v113
    %v153 = vunpack.c.l.b16 %v114
    %v154 = vunpack.c.h.b16 %v114
    %v155 = vunpack.c.l.b16 %v115
    %v156 = vunpack.c.h.b16 %v115
    %v157 = vunpack.c.l.b16 %v116
    %v158 = vunpack.c.h.b16 %v116
    %v159 = vunpack.c.l.b16 %v117
    %v160 = vunpack.c.h.b16 %v117
    %v161 = vunpack.c.l.b16 %v118
    %v162 = vunpack.c.h.b16 %v118
    %v163 = vunpack.c.l.b16 %v119
    %v164 = vunpack.c.h.b16 %v119
    %v165 = vunpack.c.l.b16 %v120
    %v166 = vunpack.c.h.b16 %v120
    %v167 = vunpack.c.l.b16 %v121
    %v168 = vunpack.c.h.b16 %v121
    %v169 = vunpack.c.l.b16 %v122
    %v170 = vunpack.c.h.b16 %v122
    %v171 = vpack.c.b16 %v141, %v139
    %v172 = vpack.c.b16 %v142, %v140
    %v173 = vpack.c.b16 %v145, %v143
    %v174 = vpack.c.b16 %v146, %v144
    %v175 = vpack.c.b16 %v149, %v147
    %v176 = vpack.c.b16 %v150, %v148
    %v177 = vpack.c.b16 %v153, %v151
    %v178 = vpack.c.b16 %v154, %v152
    %v179 = vpack.c.b16 %v157, %v155
    %v180 = vpack.c.b16 %v158, %v156
    %v181 = vpack.c.b16 %v161, %v159
    %v182 = vpack.c.b16 %v162, %v160
    %v183 = vpack.c.b16 %v165, %v163
    %v184 = vpack.c.b16 %v166, %v164
    %v185 = vpack.c.b16 %v169, %v167
    %v186 = vpack.c.b16 %v170, %v168
    %203 = vmatprep.subr.bf16.mxu0 %v186
    %204 = vmatpush1.bf16.msra.mxu0 %v185
    %205 = vmatprep.subr.bf16.mxu0 %v184
    %206 = vmatpush1.bf16.msra.mxu0 %v183
    %207 = vmatprep.subr.bf16.mxu0 %v182
    %208 = vmatpush1.bf16.msra.mxu0 %v181
    %209 = vmatprep.subr.bf16.mxu0 %v180
    %210 = vmatpush1.bf16.msra.mxu0 %v179
    %211 = vmatprep.subr.bf16.mxu0 %v178
    %212 = vmatpush1.bf16.msra.mxu0 %v177
    %213 = vmatprep.subr.bf16.mxu0 %v176
    %214 = vmatpush1.bf16.msra.mxu0 %v175
    %215 = vmatprep.subr.bf16.mxu0 %v174
    %216 = vmatpush1.bf16.msra.mxu0 %v173
    %217 = vmatprep.subr.bf16.mxu0 %v172
    %218 = vmatpush1.bf16.msra.mxu0 %v171
    %219 = vmatprep.subr.bf16.mxu0 0
    %220 = vmatpush2.bf16.msra.mxu0 0
    %221 = vmatprep.subr.bf16.mxu0 0
    %222 = vmatpush2.bf16.msra.mxu0 0
    %223 = vmatprep.subr.bf16.mxu0 0
    %224 = vmatpush2.bf16.msra.mxu0 0
    %225 = vmatprep.subr.bf16.mxu0 0
    %226 = vmatpush2.bf16.msra.mxu0 0
    %227 = vmatprep.subr.bf16.mxu0 0
    %228 = vmatpush2.bf16.msra.mxu0 0
    %229 = vmatprep.subr.bf16.mxu0 0
    %230 = vmatpush2.bf16.msra.mxu0 0
    %231 = vmatprep.subr.bf16.mxu0 0
    %232 = vmatpush2.bf16.msra.mxu0 0
    %233 = vmatprep.subr.bf16.mxu0 0
    %234 = vmatpush2.bf16.msra.mxu0 0
    %235 = vmatprep.mubr.bf16.mxu0 0
    %236 = vmatmul.mubr.bf16.gmra.mxu0 %v106
    %v237 = vpop.f32.mrf.mxu0
    %v238 = vadd.f32 0.0, %v237
    %v239 = vpop.f32.mrf.mxu0
    %v240 = vadd.f32 0.0, %v239
    %v241 = vpop.f32.mrf.mxu0
    %v242 = vpop.f32.mrf.mxu0
    %243 = vdwg.mxu0
    %v244 = vpack.c.bf16 %v238, %v238
    %v245 = vpack.c.bf16 %v240, %v240
    %v246 = vld [vmem:[%s4] sm:$0x7f]
    %v247 = vld [vmem:[#allocation5] sm:$0xff]
    %v248 = vld [vmem:[#allocation5 + $0x8] sm:$0xff]
    %v249 = vld [vmem:[#allocation5 + $0x10] sm:$0xff]
    %v250 = vld [vmem:[#allocation5 + $0x18] sm:$0xff]
    %v251 = vld [vmem:[#allocation5 + $0x20] sm:$0xff]
    %v252 = vld [vmem:[#allocation5 + $0x28] sm:$0xff]
    %v253 = vld [vmem:[#allocation5 + $0x30] sm:$0xff]
    %v254 = vld [vmem:[#allocation5 + $0x38] sm:$0xff]
    %v255 = vld [vmem:[#allocation5 + $0x40] sm:$0xff]
    %v256 = vld [vmem:[#allocation5 + $0x48] sm:$0xff]
    %v257 = vld [vmem:[#allocation5 + $0x50] sm:$0xff]
    %v258 = vld [vmem:[#allocation5 + $0x58] sm:$0xff]
    %v259 = vld [vmem:[#allocation5 + $0x60] sm:$0xff]
    %v260 = vld [vmem:[#allocation5 + $0x68] sm:$0xff]
    %v261 = vld [vmem:[#allocation5 + $0x70] sm:$0xff]
    %v262 = vld [vmem:[#allocation5 + $0x78] sm:$0xff]
    %v263 = vld [vmem:[#allocation5 + $0x80] sm:$0xff]
    %v264 = vld [vmem:[#allocation5 + $0x88] sm:$0xff]
    %v265 = vld [vmem:[#allocation5 + $0x90] sm:$0xff]
    %v266 = vld [vmem:[#allocation5 + $0x98] sm:$0xff]
    %v267 = vld [vmem:[#allocation5 + $0xa0] sm:$0xff]
    %v268 = vld [vmem:[#allocation5 + $0xa8] sm:$0xff]
    %v269 = vld [vmem:[#allocation5 + $0xb0] sm:$0xff]
    %v270 = vld [vmem:[#allocation5 + $0xb8] sm:$0xff]
    %v271 = vld [vmem:[#allocation5 + $0xc0] sm:$0xff]
    %v272 = vld [vmem:[#allocation5 + $0xc8] sm:$0xff]
    %v273 = vld [vmem:[#allocation5 + $0xd0] sm:$0xff]
    %v274 = vld [vmem:[#allocation5 + $0xd8] sm:$0xff]
    %v275 = vld [vmem:[#allocation5 + $0xe0] sm:$0xff]
    %v276 = vld [vmem:[#allocation5 + $0xe8] sm:$0xff]
    %v277 = vld [vmem:[#allocation5 + $0xf0] sm:$0xff]
    %v278 = vld [vmem:[#allocation5 + $0xf8] sm:$0xff]
    %v311 = vunpack.c.l.b16 %v247
    %v312 = vunpack.c.h.b16 %v247
    %v313 = vunpack.c.l.b16 %v248
    %v314 = vunpack.c.h.b16 %v248
    %v315 = vunpack.c.l.b16 %v249
    %v316 = vunpack.c.h.b16 %v249
    %v317 = vunpack.c.l.b16 %v250
    %v318 = vunpack.c.h.b16 %v250
    %v319 = vunpack.c.l.b16 %v251
    %v320 = vunpack.c.h.b16 %v251
    %v321 = vunpack.c.l.b16 %v252
    %v322 = vunpack.c.h.b16 %v252
    %v323 = vunpack.c.l.b16 %v253
    %v324 = vunpack.c.h.b16 %v253
    %v325 = vunpack.c.l.b16 %v254
    %v326 = vunpack.c.h.b16 %v254
    %v327 = vunpack.c.l.b16 %v255
    %v328 = vunpack.c.h.b16 %v255
    %v329 = vunpack.c.l.b16 %v256
    %v330 = vunpack.c.h.b16 %v256
    %v331 = vunpack.c.l.b16 %v257
    %v332 = vunpack.c.h.b16 %v257
    %v333 = vunpack.c.l.b16 %v258
    %v334 = vunpack.c.h.b16 %v258
    %v335 = vunpack.c.l.b16 %v259
    %v336 = vunpack.c.h.b16 %v259
    %v337 = vunpack.c.l.b16 %v260
    %v338 = vunpack.c.h.b16 %v260
    %v339 = vunpack.c.l.b16 %v261
    %v340 = vunpack.c.h.b16 %v261
    %v341 = vunpack.c.l.b16 %v262
    %v342 = vunpack.c.h.b16 %v262
    %v343 = vunpack.c.l.b16 %v263
    %v344 = vunpack.c.h.b16 %v263
    %v345 = vunpack.c.l.b16 %v264
    %v346 = vunpack.c.h.b16 %v264
    %v347 = vunpack.c.l.b16 %v265
    %v348 = vunpack.c.h.b16 %v265
    %v349 = vunpack.c.l.b16 %v266
    %v350 = vunpack.c.h.b16 %v266
    %v351 = vunpack.c.l.b16 %v267
    %v352 = vunpack.c.h.b16 %v267
    %v353 = vunpack.c.l.b16 %v268
    %v354 = vunpack.c.h.b16 %v268
    %v355 = vunpack.c.l.b16 %v269
    %v356 = vunpack.c.h.b16 %v269
    %v357 = vunpack.c.l.b16 %v270
    %v358 = vunpack.c.h.b16 %v270
    %v359 = vunpack.c.l.b16 %v271
    %v360 = vunpack.c.h.b16 %v271
    %v361 = vunpack.c.l.b16 %v272
    %v362 = vunpack.c.h.b16 %v272
    %v363 = vunpack.c.l.b16 %v273
    %v364 = vunpack.c.h.b16 %v273
    %v365 = vunpack.c.l.b16 %v274
    %v366 = vunpack.c.h.b16 %v274
    %v367 = vunpack.c.l.b16 %v275
    %v368 = vunpack.c.h.b16 %v275
    %v369 = vunpack.c.l.b16 %v276
    %v370 = vunpack.c.h.b16 %v276
    %v371 = vunpack.c.l.b16 %v277
    %v372 = vunpack.c.h.b16 %v277
    %v373 = vunpack.c.l.b16 %v278
    %v374 = vunpack.c.h.b16 %v278
    %v375 = vpack.c.b16 %v313, %v311
    %v376 = vpack.c.b16 %v314, %v312
    %v377 = vpack.c.b16 %v317, %v315
    %v378 = vpack.c.b16 %v318, %v316
    %v379 = vpack.c.b16 %v321, %v319
    %v380 = vpack.c.b16 %v322, %v320
    %v381 = vpack.c.b16 %v325, %v323
    %v382 = vpack.c.b16 %v326, %v324
    %v383 = vpack.c.b16 %v329, %v327
    %v384 = vpack.c.b16 %v330, %v328
    %v385 = vpack.c.b16 %v333, %v331
    %v386 = vpack.c.b16 %v334, %v332
    %v387 = vpack.c.b16 %v337, %v335
    %v388 = vpack.c.b16 %v338, %v336
    %v389 = vpack.c.b16 %v341, %v339
    %v390 = vpack.c.b16 %v342, %v340
    %v391 = vpack.c.b16 %v345, %v343
    %v392 = vpack.c.b16 %v346, %v344
    %v393 = vpack.c.b16 %v349, %v347
    %v394 = vpack.c.b16 %v350, %v348
    %v395 = vpack.c.b16 %v353, %v351
    %v396 = vpack.c.b16 %v354, %v352
    %v397 = vpack.c.b16 %v357, %v355
    %v398 = vpack.c.b16 %v358, %v356
    %v399 = vpack.c.b16 %v361, %v359
    %v400 = vpack.c.b16 %v362, %v360
    %v401 = vpack.c.b16 %v365, %v363
    %v402 = vpack.c.b16 %v366, %v364
    %v403 = vpack.c.b16 %v369, %v367
    %v404 = vpack.c.b16 %v370, %v368
    %v405 = vpack.c.b16 %v373, %v371
    %v406 = vpack.c.b16 %v374, %v372
    %439 = vmatprep.subr.bf16.mxu0 %v390
    %440 = vmatpush1.bf16.msra.mxu0 %v389
    %441 = vmatprep.subr.bf16.mxu0 %v388
    %442 = vmatpush1.bf16.msra.mxu0 %v387
    %443 = vmatprep.subr.bf16.mxu0 %v386
    %444 = vmatpush1.bf16.msra.mxu0 %v385
    %445 = vmatprep.subr.bf16.mxu0 %v384
    %446 = vmatpush1.bf16.msra.mxu0 %v383
    %447 = vmatprep.subr.bf16.mxu0 %v382
    %448 = vmatpush1.bf16.msra.mxu0 %v381
    %449 = vmatprep.subr.bf16.mxu0 %v380
    %450 = vmatpush1.bf16.msra.mxu0 %v379
    %451 = vmatprep.subr.bf16.mxu0 %v378
    %452 = vmatpush1.bf16.msra.mxu0 %v377
    %453 = vmatprep.subr.bf16.mxu0 %v376
    %454 = vmatpush1.bf16.msra.mxu0 %v375
    %455 = vmatprep.subr.bf16.mxu0 %v406
    %456 = vmatpush2.bf16.msra.mxu0 %v405
    %457 = vmatprep.subr.bf16.mxu0 %v404
    %458 = vmatpush2.bf16.msra.mxu0 %v403
    %459 = vmatprep.subr.bf16.mxu0 %v402
    %460 = vmatpush2.bf16.msra.mxu0 %v401
    %461 = vmatprep.subr.bf16.mxu0 %v400
    %462 = vmatpush2.bf16.msra.mxu0 %v399
    %463 = vmatprep.subr.bf16.mxu0 %v398
    %464 = vmatpush2.bf16.msra.mxu0 %v397
    %465 = vmatprep.subr.bf16.mxu0 %v396
    %466 = vmatpush2.bf16.msra.mxu0 %v395
    %467 = vmatprep.subr.bf16.mxu0 %v394
    %468 = vmatpush2.bf16.msra.mxu0 %v393
    %469 = vmatprep.subr.bf16.mxu0 %v392
    %470 = vmatpush2.bf16.msra.mxu0 %v391
    %471 = vmatprep.mubr.bf16.mxu0 %v245
    %472 = vmatmul.mubr.bf16.gmra.mxu0 %v244
    %v473 = vpop.f32.mrf.mxu0
    %v474 = vadd.f32 0.0, %v473
    %v475 = vpop.f32.mrf.mxu0
    %v476 = vadd.f32 0.0, %v475
    %v477 = vpop.f32.mrf.mxu0
    %v478 = vpop.f32.mrf.mxu0
    %479 = vdwg.mxu0
    %v480 = vlaneseq
    %v481 = vshrl.u32 %v480, 7
    %v482 = vsub.s32 0, %v481
    %v483 = vrot.slane %v246, %v482
    %v484 = vadd.f32 %v476, %v483
    %v485 = vmax.f32 %v484, 0.0
    %v486 = vlaneseq
    %v487 = vshrl.u32 %v486, 7
    %v488 = vsub.s32 5, %v487
    %v489 = vrot.slane %v246, %v488
    %v490 = vadd.f32 %v474, %v489
    %v491 = vadd.f32 %v490, %v240
    %s492 = scalar_lea.vmem [#allocation5], 256
    %v493 = vld [vmem:[%s492] sm:$0xff]
    %v494 = vld [vmem:[%s492 + $0x8] sm:$0xff]
    %v495 = vld [vmem:[%s492 + $0x10] sm:$0xff]
    %v496 = vld [vmem:[%s492 + $0x18] sm:$0xff]
    %v497 = vld [vmem:[%s492 + $0x20] sm:$0xff]
    %v498 = vld [vmem:[%s492 + $0x28] sm:$0xff]
    %v499 = vld [vmem:[%s492 + $0x30] sm:$0xff]
    %v500 = vld [vmem:[%s492 + $0x38] sm:$0xff]
    %v501 = vld [vmem:[%s492 + $0x40] sm:$0xff]
    %v502 = vld [vmem:[%s492 + $0x48] sm:$0xff]
    %v503 = vld [vmem:[%s492 + $0x50] sm:$0xff]
    %v504 = vld [vmem:[%s492 + $0x58] sm:$0xff]
    %v505 = vld [vmem:[%s492 + $0x60] sm:$0xff]
    %v506 = vld [vmem:[%s492 + $0x68] sm:$0xff]
    %v507 = vld [vmem:[%s492 + $0x70] sm:$0xff]
    %v508 = vld [vmem:[%s492 + $0x78] sm:$0xff]
    %v509 = vld [vmem:[%s492 + $0x80] sm:$0xff]
    %v510 = vld [vmem:[%s492 + $0x88] sm:$0xff]
    %v511 = vld [vmem:[%s492 + $0x90] sm:$0xff]
    %v512 = vld [vmem:[%s492 + $0x98] sm:$0xff]
    %v513 = vld [vmem:[%s492 + $0xa0] sm:$0xff]
    %v514 = vld [vmem:[%s492 + $0xa8] sm:$0xff]
    %v515 = vld [vmem:[%s492 + $0xb0] sm:$0xff]
    %v516 = vld [vmem:[%s492 + $0xb8] sm:$0xff]
    %v517 = vld [vmem:[%s492 + $0xc0] sm:$0xff]
    %v518 = vld [vmem:[%s492 + $0xc8] sm:$0xff]
    %v519 = vld [vmem:[%s492 + $0xd0] sm:$0xff]
    %v520 = vld [vmem:[%s492 + $0xd8] sm:$0xff]
    %v521 = vld [vmem:[%s492 + $0xe0] sm:$0xff]
    %v522 = vld [vmem:[%s492 + $0xe8] sm:$0xff]
    %v523 = vld [vmem:[%s492 + $0xf0] sm:$0xff]
    %v524 = vld [vmem:[%s492 + $0xf8] sm:$0xff]
    %v557 = vunpack.c.l.b16 %v493
    %v558 = vunpack.c.h.b16 %v493
    %v559 = vunpack.c.l.b16 %v494
    %v560 = vunpack.c.h.b16 %v494
    %v561 = vunpack.c.l.b16 %v495
    %v562 = vunpack.c.h.b16 %v495
    %v563 = vunpack.c.l.b16 %v496
    %v564 = vunpack.c.h.b16 %v496
    %v565 = vunpack.c.l.b16 %v497
    %v566 = vunpack.c.h.b16 %v497
    %v567 = vunpack.c.l.b16 %v498
    %v568 = vunpack.c.h.b16 %v498
    %v569 = vunpack.c.l.b16 %v499
    %v570 = vunpack.c.h.b16 %v499
    %v571 = vunpack.c.l.b16 %v500
    %v572 = vunpack.c.h.b16 %v500
    %v573 = vunpack.c.l.b16 %v501
    %v574 = vunpack.c.h.b16 %v501
    %v575 = vunpack.c.l.b16 %v502
    %v576 = vunpack.c.h.b16 %v502
    %v577 = vunpack.c.l.b16 %v503
    %v578 = vunpack.c.h.b16 %v503
    %v579 = vunpack.c.l.b16 %v504
    %v580 = vunpack.c.h.b16 %v504
    %v581 = vunpack.c.l.b16 %v505
    %v582 = vunpack.c.h.b16 %v505
    %v583 = vunpack.c.l.b16 %v506
    %v584 = vunpack.c.h.b16 %v506
    %v585 = vunpack.c.l.b16 %v507
    %v586 = vunpack.c.h.b16 %v507
    %v587 = vunpack.c.l.b16 %v508
    %v588 = vunpack.c.h.b16 %v508
    %v589 = vunpack.c.l.b16 %v509
    %v590 = vunpack.c.h.b16 %v509
    %v591 = vunpack.c.l.b16 %v510
    %v592 = vunpack.c.h.b16 %v510
    %v593 = vunpack.c.l.b16 %v511
    %v594 = vunpack.c.h.b16 %v511
    %v595 = vunpack.c.l.b16 %v512
    %v596 = vunpack.c.h.b16 %v512
    %v597 = vunpack.c.l.b16 %v513
    %v598 = vunpack.c.h.b16 %v513
    %v599 = vunpack.c.l.b16 %v514
    %v600 = vunpack.c.h.b16 %v514
    %v601 = vunpack.c.l.b16 %v515
    %v602 = vunpack.c.h.b16 %v515
    %v603 = vunpack.c.l.b16 %v516
    %v604 = vunpack.c.h.b16 %v516
    %v605 = vunpack.c.l.b16 %v517
    %v606 = vunpack.c.h.b16 %v517
    %v607 = vunpack.c.l.b16 %v518
    %v608 = vunpack.c.h.b16 %v518
    %v609 = vunpack.c.l.b16 %v519
    %v610 = vunpack.c.h.b16 %v519
    %v611 = vunpack.c.l.b16 %v520
    %v612 = vunpack.c.h.b16 %v520
    %v613 = vunpack.c.l.b16 %v521
    %v614 = vunpack.c.h.b16 %v521
    %v615 = vunpack.c.l.b16 %v522
    %v616 = vunpack.c.h.b16 %v522
    %v617 = vunpack.c.l.b16 %v523
    %v618 = vunpack.c.h.b16 %v523
    %v619 = vunpack.c.l.b16 %v524
    %v620 = vunpack.c.h.b16 %v524
    %v621 = vpack.c.b16 %v559, %v557
    %v622 = vpack.c.b16 %v560, %v558
    %v623 = vpack.c.b16 %v563, %v561
    %v624 = vpack.c.b16 %v564, %v562
    %v625 = vpack.c.b16 %v567, %v565
    %v626 = vpack.c.b16 %v568, %v566
    %v627 = vpack.c.b16 %v571, %v569
    %v628 = vpack.c.b16 %v572, %v570
    %v629 = vpack.c.b16 %v575, %v573
    %v630 = vpack.c.b16 %v576, %v574
    %v631 = vpack.c.b16 %v579, %v577
    %v632 = vpack.c.b16 %v580, %v578
    %v633 = vpack.c.b16 %v583, %v581
    %v634 = vpack.c.b16 %v584, %v582
    %v635 = vpack.c.b16 %v587, %v585
    %v636 = vpack.c.b16 %v588, %v586
    %v637 = vpack.c.b16 %v591, %v589
    %v638 = vpack.c.b16 %v592, %v590
    %v639 = vpack.c.b16 %v595, %v593
    %v640 = vpack.c.b16 %v596, %v594
    %v641 = vpack.c.b16 %v599, %v597
    %v642 = vpack.c.b16 %v600, %v598
    %v643 = vpack.c.b16 %v603, %v601
    %v644 = vpack.c.b16 %v604, %v602
    %v645 = vpack.c.b16 %v607, %v605
    %v646 = vpack.c.b16 %v608, %v606
    %v647 = vpack.c.b16 %v611, %v609
    %v648 = vpack.c.b16 %v612, %v610
    %v649 = vpack.c.b16 %v615, %v613
    %v650 = vpack.c.b16 %v616, %v614
    %v651 = vpack.c.b16 %v619, %v617
    %v652 = vpack.c.b16 %v620, %v618
    %685 = vmatprep.subr.bf16.mxu0 %v636
    %686 = vmatpush1.bf16.msra.mxu0 %v635
    %687 = vmatprep.subr.bf16.mxu0 %v634
    %688 = vmatpush1.bf16.msra.mxu0 %v633
    %689 = vmatprep.subr.bf16.mxu0 %v632
    %690 = vmatpush1.bf16.msra.mxu0 %v631
    %691 = vmatprep.subr.bf16.mxu0 %v630
    %692 = vmatpush1.bf16.msra.mxu0 %v629
    %693 = vmatprep.subr.bf16.mxu0 %v628
    %694 = vmatpush1.bf16.msra.mxu0 %v627
    %695 = vmatprep.subr.bf16.mxu0 %v626
    %696 = vmatpush1.bf16.msra.mxu0 %v625
    %697 = vmatprep.subr.bf16.mxu0 %v624
    %698 = vmatpush1.bf16.msra.mxu0 %v623
    %699 = vmatprep.subr.bf16.mxu0 %v622
    %700 = vmatpush1.bf16.msra.mxu0 %v621
    %701 = vmatprep.subr.bf16.mxu0 %v652
    %702 = vmatpush2.bf16.msra.mxu0 %v651
    %703 = vmatprep.subr.bf16.mxu0 %v650
    %704 = vmatpush2.bf16.msra.mxu0 %v649
    %705 = vmatprep.subr.bf16.mxu0 %v648
    %706 = vmatpush2.bf16.msra.mxu0 %v647
    %707 = vmatprep.subr.bf16.mxu0 %v646
    %708 = vmatpush2.bf16.msra.mxu0 %v645
    %709 = vmatprep.subr.bf16.mxu0 %v644
    %710 = vmatpush2.bf16.msra.mxu0 %v643
    %711 = vmatprep.subr.bf16.mxu0 %v642
    %712 = vmatpush2.bf16.msra.mxu0 %v641
    %713 = vmatprep.subr.bf16.mxu0 %v640
    %714 = vmatpush2.bf16.msra.mxu0 %v639
    %715 = vmatprep.subr.bf16.mxu0 %v638
    %716 = vmatpush2.bf16.msra.mxu0 %v637
    %717 = vmatprep.mubr.bf16.mxu0 %v245
    %718 = vmatmul.mubr.bf16.gmra.mxu0 %v244
    %v719 = vpop.f32.mrf.mxu0
    %v720 = vpop.f32.mrf.mxu0
    %v721 = vadd.f32 0.0, %v720
    %v722 = vpop.f32.mrf.mxu0
    %v723 = vpop.f32.mrf.mxu0
    %724 = vdwg.mxu0
    %v725 = vlaneseq
    %v726 = vshrl.u32 %v725, 7
    %v727 = vsub.s32 1, %v726
    %v728 = vrot.slane %v246, %v727
    %v729 = vadd.f32 %v721, %v728
    %v730 = vmax.f32 %v729, 0.0
    %v731 = vmax.f32 %v485, %v730
    %s732 = scalar_lea.vmem [#allocation5], 512
    %v733 = vld [vmem:[%s732] sm:$0xff]
    %v734 = vld [vmem:[%s732 + $0x8] sm:$0xff]
    %v735 = vld [vmem:[%s732 + $0x10] sm:$0xff]
    %v736 = vld [vmem:[%s732 + $0x18] sm:$0xff]
    %v737 = vld [vmem:[%s732 + $0x20] sm:$0xff]
    %v738 = vld [vmem:[%s732 + $0x28] sm:$0xff]
    %v739 = vld [vmem:[%s732 + $0x30] sm:$0xff]
    %v740 = vld [vmem:[%s732 + $0x38] sm:$0xff]
    %v741 = vld [vmem:[%s732 + $0x40] sm:$0xff]
    %v742 = vld [vmem:[%s732 + $0x48] sm:$0xff]
    %v743 = vld [vmem:[%s732 + $0x50] sm:$0xff]
    %v744 = vld [vmem:[%s732 + $0x58] sm:$0xff]
    %v745 = vld [vmem:[%s732 + $0x60] sm:$0xff]
    %v746 = vld [vmem:[%s732 + $0x68] sm:$0xff]
    %v747 = vld [vmem:[%s732 + $0x70] sm:$0xff]
    %v748 = vld [vmem:[%s732 + $0x78] sm:$0xff]
    %v749 = vld [vmem:[%s732 + $0x80] sm:$0xff]
    %v750 = vld [vmem:[%s732 + $0x88] sm:$0xff]
    %v751 = vld [vmem:[%s732 + $0x90] sm:$0xff]
    %v752 = vld [vmem:[%s732 + $0x98] sm:$0xff]
    %v753 = vld [vmem:[%s732 + $0xa0] sm:$0xff]
    %v754 = vld [vmem:[%s732 + $0xa8] sm:$0xff]
    %v755 = vld [vmem:[%s732 + $0xb0] sm:$0xff]
    %v756 = vld [vmem:[%s732 + $0xb8] sm:$0xff]
    %v757 = vld [vmem:[%s732 + $0xc0] sm:$0xff]
    %v758 = vld [vmem:[%s732 + $0xc8] sm:$0xff]
    %v759 = vld [vmem:[%s732 + $0xd0] sm:$0xff]
    %v760 = vld [vmem:[%s732 + $0xd8] sm:$0xff]
    %v761 = vld [vmem:[%s732 + $0xe0] sm:$0xff]
    %v762 = vld [vmem:[%s732 + $0xe8] sm:$0xff]
    %v763 = vld [vmem:[%s732 + $0xf0] sm:$0xff]
    %v764 = vld [vmem:[%s732 + $0xf8] sm:$0xff]
    %v797 = vunpack.c.l.b16 %v733
    %v798 = vunpack.c.h.b16 %v733
    %v799 = vunpack.c.l.b16 %v734
    %v800 = vunpack.c.h.b16 %v734
    %v801 = vunpack.c.l.b16 %v735
    %v802 = vunpack.c.h.b16 %v735
    %v803 = vunpack.c.l.b16 %v736
    %v804 = vunpack.c.h.b16 %v736
    %v805 = vunpack.c.l.b16 %v737
    %v806 = vunpack.c.h.b16 %v737
    %v807 = vunpack.c.l.b16 %v738
    %v808 = vunpack.c.h.b16 %v738
    %v809 = vunpack.c.l.b16 %v739
    %v810 = vunpack.c.h.b16 %v739
    %v811 = vunpack.c.l.b16 %v740
    %v812 = vunpack.c.h.b16 %v740
    %v813 = vunpack.c.l.b16 %v741
    %v814 = vunpack.c.h.b16 %v741
    %v815 = vunpack.c.l.b16 %v742
    %v816 = vunpack.c.h.b16 %v742
    %v817 = vunpack.c.l.b16 %v743
    %v818 = vunpack.c.h.b16 %v743
    %v819 = vunpack.c.l.b16 %v744
    %v820 = vunpack.c.h.b16 %v744
    %v821 = vunpack.c.l.b16 %v745
    %v822 = vunpack.c.h.b16 %v745
    %v823 = vunpack.c.l.b16 %v746
    %v824 = vunpack.c.h.b16 %v746
    %v825 = vunpack.c.l.b16 %v747
    %v826 = vunpack.c.h.b16 %v747
    %v827 = vunpack.c.l.b16 %v748
    %v828 = vunpack.c.h.b16 %v748
    %v829 = vunpack.c.l.b16 %v749
    %v830 = vunpack.c.h.b16 %v749
    %v831 = vunpack.c.l.b16 %v750
    %v832 = vunpack.c.h.b16 %v750
    %v833 = vunpack.c.l.b16 %v751
    %v834 = vunpack.c.h.b16 %v751
    %v835 = vunpack.c.l.b16 %v752
    %v836 = vunpack.c.h.b16 %v752
    %v837 = vunpack.c.l.b16 %v753
    %v838 = vunpack.c.h.b16 %v753
    %v839 = vunpack.c.l.b16 %v754
    %v840 = vunpack.c.h.b16 %v754
    %v841 = vunpack.c.l.b16 %v755
    %v842 = vunpack.c.h.b16 %v755
    %v843 = vunpack.c.l.b16 %v756
    %v844 = vunpack.c.h.b16 %v756
    %v845 = vunpack.c.l.b16 %v757
    %v846 = vunpack.c.h.b16 %v757
    %v847 = vunpack.c.l.b16 %v758
    %v848 = vunpack.c.h.b16 %v758
    %v849 = vunpack.c.l.b16 %v759
    %v850 = vunpack.c.h.b16 %v759
    %v851 = vunpack.c.l.b16 %v760
    %v852 = vunpack.c.h.b16 %v760
    %v853 = vunpack.c.l.b16 %v761
    %v854 = vunpack.c.h.b16 %v761
    %v855 = vunpack.c.l.b16 %v762
    %v856 = vunpack.c.h.b16 %v762
    %v857 = vunpack.c.l.b16 %v763
    %v858 = vunpack.c.h.b16 %v763
    %v859 = vunpack.c.l.b16 %v764
    %v860 = vunpack.c.h.b16 %v764
    %v861 = vpack.c.b16 %v799, %v797
    %v862 = vpack.c.b16 %v800, %v798
    %v863 = vpack.c.b16 %v803, %v801
    %v864 = vpack.c.b16 %v804, %v802
    %v865 = vpack.c.b16 %v807, %v805
    %v866 = vpack.c.b16 %v808, %v806
    %v867 = vpack.c.b16 %v811, %v809
    %v868 = vpack.c.b16 %v812, %v810
    %v869 = vpack.c.b16 %v815, %v813
    %v870 = vpack.c.b16 %v816, %v814
    %v871 = vpack.c.b16 %v819, %v817
    %v872 = vpack.c.b16 %v820, %v818
    %v873 = vpack.c.b16 %v823, %v821
    %v874 = vpack.c.b16 %v824, %v822
    %v875 = vpack.c.b16 %v827, %v825
    %v876 = vpack.c.b16 %v828, %v826
    %v877 = vpack.c.b16 %v831, %v829
    %v878 = vpack.c.b16 %v832, %v830
    %v879 = vpack.c.b16 %v835, %v833
    %v880 = vpack.c.b16 %v836, %v834
    %v881 = vpack.c.b16 %v839, %v837
    %v882 = vpack.c.b16 %v840, %v838
    %v883 = vpack.c.b16 %v843, %v841
    %v884 = vpack.c.b16 %v844, %v842
    %v885 = vpack.c.b16 %v847, %v845
    %v886 = vpack.c.b16 %v848, %v846
    %v887 = vpack.c.b16 %v851, %v849
    %v888 = vpack.c.b16 %v852, %v850
    %v889 = vpack.c.b16 %v855, %v853
    %v890 = vpack.c.b16 %v856, %v854
    %v891 = vpack.c.b16 %v859, %v857
    %v892 = vpack.c.b16 %v860, %v858
    %925 = vmatprep.subr.bf16.mxu0 %v876
    %926 = vmatpush1.bf16.msra.mxu0 %v875
    %927 = vmatprep.subr.bf16.mxu0 %v874
    %928 = vmatpush1.bf16.msra.mxu0 %v873
    %929 = vmatprep.subr.bf16.mxu0 %v872
    %930 = vmatpush1.bf16.msra.mxu0 %v871
    %931 = vmatprep.subr.bf16.mxu0 %v870
    %932 = vmatpush1.bf16.msra.mxu0 %v869
    %933 = vmatprep.subr.bf16.mxu0 %v868
    %934 = vmatpush1.bf16.msra.mxu0 %v867
    %935 = vmatprep.subr.bf16.mxu0 %v866
    %936 = vmatpush1.bf16.msra.mxu0 %v865
    %937 = vmatprep.subr.bf16.mxu0 %v864
    %938 = vmatpush1.bf16.msra.mxu0 %v863
    %939 = vmatprep.subr.bf16.mxu0 %v862
    %940 = vmatpush1.bf16.msra.mxu0 %v861
    %941 = vmatprep.subr.bf16.mxu0 %v892
    %942 = vmatpush2.bf16.msra.mxu0 %v891
    %943 = vmatprep.subr.bf16.mxu0 %v890
    %944 = vmatpush2.bf16.msra.mxu0 %v889
    %945 = vmatprep.subr.bf16.mxu0 %v888
    %946 = vmatpush2.bf16.msra.mxu0 %v887
    %947 = vmatprep.subr.bf16.mxu0 %v886
    %948 = vmatpush2.bf16.msra.mxu0 %v885
    %949 = vmatprep.subr.bf16.mxu0 %v884
    %950 = vmatpush2.bf16.msra.mxu0 %v883
    %951 = vmatprep.subr.bf16.mxu0 %v882
    %952 = vmatpush2.bf16.msra.mxu0 %v881
    %953 = vmatprep.subr.bf16.mxu0 %v880
    %954 = vmatpush2.bf16.msra.mxu0 %v879
    %955 = vmatprep.subr.bf16.mxu0 %v878
    %956 = vmatpush2.bf16.msra.mxu0 %v877
    %957 = vmatprep.mubr.bf16.mxu0 %v245
    %958 = vmatmul.mubr.bf16.gmra.mxu0 %v244
    %v959 = vpop.f32.mrf.mxu0
    %v960 = vpop.f32.mrf.mxu0
    %v961 = vadd.f32 0.0, %v960
    %v962 = vpop.f32.mrf.mxu0
    %v963 = vpop.f32.mrf.mxu0
    %964 = vdwg.mxu0
    %v965 = vlaneseq
    %v966 = vshrl.u32 %v965, 7
    %v967 = vsub.s32 2, %v966
    %v968 = vrot.slane %v246, %v967
    %v969 = vadd.f32 %v961, %v968
    %v970 = vmax.f32 %v969, 0.0
    %v971 = vmax.f32 %v731, %v970
    %s972 = scalar_lea.vmem [#allocation5], 768
    %v973 = vld [vmem:[%s972] sm:$0xff]
    %v974 = vld [vmem:[%s972 + $0x8] sm:$0xff]
    %v975 = vld [vmem:[%s972 + $0x10] sm:$0xff]
    %v976 = vld [vmem:[%s972 + $0x18] sm:$0xff]
    %v977 = vld [vmem:[%s972 + $0x20] sm:$0xff]
    %v978 = vld [vmem:[%s972 + $0x28] sm:$0xff]
    %v979 = vld [vmem:[%s972 + $0x30] sm:$0xff]
    %v980 = vld [vmem:[%s972 + $0x38] sm:$0xff]
    %v981 = vld [vmem:[%s972 + $0x40] sm:$0xff]
    %v982 = vld [vmem:[%s972 + $0x48] sm:$0xff]
    %v983 = vld [vmem:[%s972 + $0x50] sm:$0xff]
    %v984 = vld [vmem:[%s972 + $0x58] sm:$0xff]
    %v985 = vld [vmem:[%s972 + $0x60] sm:$0xff]
    %v986 = vld [vmem:[%s972 + $0x68] sm:$0xff]
    %v987 = vld [vmem:[%s972 + $0x70] sm:$0xff]
    %v988 = vld [vmem:[%s972 + $0x78] sm:$0xff]
    %v989 = vld [vmem:[%s972 + $0x80] sm:$0xff]
    %v990 = vld [vmem:[%s972 + $0x88] sm:$0xff]
    %v991 = vld [vmem:[%s972 + $0x90] sm:$0xff]
    %v992 = vld [vmem:[%s972 + $0x98] sm:$0xff]
    %v993 = vld [vmem:[%s972 + $0xa0] sm:$0xff]
    %v994 = vld [vmem:[%s972 + $0xa8] sm:$0xff]
    %v995 = vld [vmem:[%s972 + $0xb0] sm:$0xff]
    %v996 = vld [vmem:[%s972 + $0xb8] sm:$0xff]
    %v997 = vld [vmem:[%s972 + $0xc0] sm:$0xff]
    %v998 = vld [vmem:[%s972 + $0xc8] sm:$0xff]
    %v999 = vld [vmem:[%s972 + $0xd0] sm:$0xff]
    %v1000 = vld [vmem:[%s972 + $0xd8] sm:$0xff]
    %v1001 = vld [vmem:[%s972 + $0xe0] sm:$0xff]
    %v1002 = vld [vmem:[%s972 + $0xe8] sm:$0xff]
    %v1003 = vld [vmem:[%s972 + $0xf0] sm:$0xff]
    %v1004 = vld [vmem:[%s972 + $0xf8] sm:$0xff]
    %v1037 = vunpack.c.l.b16 %v973
    %v1038 = vunpack.c.h.b16 %v973
    %v1039 = vunpack.c.l.b16 %v974
    %v1040 = vunpack.c.h.b16 %v974
    %v1041 = vunpack.c.l.b16 %v975
    %v1042 = vunpack.c.h.b16 %v975
    %v1043 = vunpack.c.l.b16 %v976
    %v1044 = vunpack.c.h.b16 %v976
    %v1045 = vunpack.c.l.b16 %v977
    %v1046 = vunpack.c.h.b16 %v977
    %v1047 = vunpack.c.l.b16 %v978
    %v1048 = vunpack.c.h.b16 %v978
    %v1049 = vunpack.c.l.b16 %v979
    %v1050 = vunpack.c.h.b16 %v979
    %v1051 = vunpack.c.l.b16 %v980
    %v1052 = vunpack.c.h.b16 %v980
    %v1053 = vunpack.c.l.b16 %v981
    %v1054 = vunpack.c.h.b16 %v981
    %v1055 = vunpack.c.l.b16 %v982
    %v1056 = vunpack.c.h.b16 %v982
    %v1057 = vunpack.c.l.b16 %v983
    %v1058 = vunpack.c.h.b16 %v983
    %v1059 = vunpack.c.l.b16 %v984
    %v1060 = vunpack.c.h.b16 %v984
    %v1061 = vunpack.c.l.b16 %v985
    %v1062 = vunpack.c.h.b16 %v985
    %v1063 = vunpack.c.l.b16 %v986
    %v1064 = vunpack.c.h.b16 %v986
    %v1065 = vunpack.c.l.b16 %v987
    %v1066 = vunpack.c.h.b16 %v987
    %v1067 = vunpack.c.l.b16 %v988
    %v1068 = vunpack.c.h.b16 %v988
    %v1069 = vunpack.c.l.b16 %v989
    %v1070 = vunpack.c.h.b16 %v989
    %v1071 = vunpack.c.l.b16 %v990
    %v1072 = vunpack.c.h.b16 %v990
    %v1073 = vunpack.c.l.b16 %v991
    %v1074 = vunpack.c.h.b16 %v991
    %v1075 = vunpack.c.l.b16 %v992
    %v1076 = vunpack.c.h.b16 %v992
    %v1077 = vunpack.c.l.b16 %v993
    %v1078 = vunpack.c.h.b16 %v993
    %v1079 = vunpack.c.l.b16 %v994
    %v1080 = vunpack.c.h.b16 %v994
    %v1081 = vunpack.c.l.b16 %v995
    %v1082 = vunpack.c.h.b16 %v995
    %v1083 = vunpack.c.l.b16 %v996
    %v1084 = vunpack.c.h.b16 %v996
    %v1085 = vunpack.c.l.b16 %v997
    %v1086 = vunpack.c.h.b16 %v997
    %v1087 = vunpack.c.l.b16 %v998
    %v1088 = vunpack.c.h.b16 %v998
    %v1089 = vunpack.c.l.b16 %v999
    %v1090 = vunpack.c.h.b16 %v999
    %v1091 = vunpack.c.l.b16 %v1000
    %v1092 = vunpack.c.h.b16 %v1000
    %v1093 = vunpack.c.l.b16 %v1001
    %v1094 = vunpack.c.h.b16 %v1001
    %v1095 = vunpack.c.l.b16 %v1002
    %v1096 = vunpack.c.h.b16 %v1002
    %v1097 = vunpack.c.l.b16 %v1003
    %v1098 = vunpack.c.h.b16 %v1003
    %v1099 = vunpack.c.l.b16 %v1004
    %v1100 = vunpack.c.h.b16 %v1004
    %v1101 = vpack.c.b16 %v1039, %v1037
    %v1102 = vpack.c.b16 %v1040, %v1038
    %v1103 = vpack.c.b16 %v1043, %v1041
    %v1104 = vpack.c.b16 %v1044, %v1042
    %v1105 = vpack.c.b16 %v1047, %v1045
    %v1106 = vpack.c.b16 %v1048, %v1046
    %v1107 = vpack.c.b16 %v1051, %v1049
    %v1108 = vpack.c.b16 %v1052, %v1050
    %v1109 = vpack.c.b16 %v1055, %v1053
    %v1110 = vpack.c.b16 %v1056, %v1054
    %v1111 = vpack.c.b16 %v1059, %v1057
    %v1112 = vpack.c.b16 %v1060, %v1058
    %v1113 = vpack.c.b16 %v1063, %v1061
    %v1114 = vpack.c.b16 %v1064, %v1062
    %v1115 = vpack.c.b16 %v1067, %v1065
    %v1116 = vpack.c.b16 %v1068, %v1066
    %v1117 = vpack.c.b16 %v1071, %v1069
    %v1118 = vpack.c.b16 %v1072, %v1070
    %v1119 = vpack.c.b16 %v1075, %v1073
    %v1120 = vpack.c.b16 %v1076, %v1074
    %v1121 = vpack.c.b16 %v1079, %v1077
    %v1122 = vpack.c.b16 %v1080, %v1078
    %v1123 = vpack.c.b16 %v1083, %v1081
    %v1124 = vpack.c.b16 %v1084, %v1082
    %v1125 = vpack.c.b16 %v1087, %v1085
    %v1126 = vpack.c.b16 %v1088, %v1086
    %v1127 = vpack.c.b16 %v1091, %v1089
    %v1128 = vpack.c.b16 %v1092, %v1090
    %v1129 = vpack.c.b16 %v1095, %v1093
    %v1130 = vpack.c.b16 %v1096, %v1094
    %v1131 = vpack.c.b16 %v1099, %v1097
    %v1132 = vpack.c.b16 %v1100, %v1098
    %1165 = vmatprep.subr.bf16.mxu0 %v1116
    %1166 = vmatpush1.bf16.msra.mxu0 %v1115
    %1167 = vmatprep.subr.bf16.mxu0 %v1114
    %1168 = vmatpush1.bf16.msra.mxu0 %v1113
    %1169 = vmatprep.subr.bf16.mxu0 %v1112
    %1170 = vmatpush1.bf16.msra.mxu0 %v1111
    %1171 = vmatprep.subr.bf16.mxu0 %v1110
    %1172 = vmatpush1.bf16.msra.mxu0 %v1109
    %1173 = vmatprep.subr.bf16.mxu0 %v1108
    %1174 = vmatpush1.bf16.msra.mxu0 %v1107
    %1175 = vmatprep.subr.bf16.mxu0 %v1106
    %1176 = vmatpush1.bf16.msra.mxu0 %v1105
    %1177 = vmatprep.subr.bf16.mxu0 %v1104
    %1178 = vmatpush1.bf16.msra.mxu0 %v1103
    %1179 = vmatprep.subr.bf16.mxu0 %v1102
    %1180 = vmatpush1.bf16.msra.mxu0 %v1101
    %1181 = vmatprep.subr.bf16.mxu0 %v1132
    %1182 = vmatpush2.bf16.msra.mxu0 %v1131
    %1183 = vmatprep.subr.bf16.mxu0 %v1130
    %1184 = vmatpush2.bf16.msra.mxu0 %v1129
    %1185 = vmatprep.subr.bf16.mxu0 %v1128
    %1186 = vmatpush2.bf16.msra.mxu0 %v1127
    %1187 = vmatprep.subr.bf16.mxu0 %v1126
    %1188 = vmatpush2.bf16.msra.mxu0 %v1125
    %1189 = vmatprep.subr.bf16.mxu0 %v1124
    %1190 = vmatpush2.bf16.msra.mxu0 %v1123
    %1191 = vmatprep.subr.bf16.mxu0 %v1122
    %1192 = vmatpush2.bf16.msra.mxu0 %v1121
    %1193 = vmatprep.subr.bf16.mxu0 %v1120
    %1194 = vmatpush2.bf16.msra.mxu0 %v1119
    %1195 = vmatprep.subr.bf16.mxu0 %v1118
    %1196 = vmatpush2.bf16.msra.mxu0 %v1117
    %1197 = vmatprep.mubr.bf16.mxu0 %v245
    %1198 = vmatmul.mubr.bf16.gmra.mxu0 %v244
    %v1199 = vpop.f32.mrf.mxu0
    %v1200 = vpop.f32.mrf.mxu0
    %v1201 = vadd.f32 0.0, %v1200
    %v1202 = vpop.f32.mrf.mxu0
    %v1203 = vpop.f32.mrf.mxu0
    %1204 = vdwg.mxu0
    %v1205 = vlaneseq
    %v1206 = vshrl.u32 %v1205, 7
    %v1207 = vsub.s32 3, %v1206
    %v1208 = vrot.slane %v246, %v1207
    %v1209 = vadd.f32 %v1201, %v1208
    %v1210 = vmax.f32 %v1209, 0.0
    %v1211 = vmax.f32 %v971, %v1210
    %s1212 = scalar_lea.vmem [#allocation5], 1024
    %v1213 = vld [vmem:[%s1212] sm:$0xff]
    %v1214 = vld [vmem:[%s1212 + $0x8] sm:$0xff]
    %v1215 = vld [vmem:[%s1212 + $0x10] sm:$0xff]
    %v1216 = vld [vmem:[%s1212 + $0x18] sm:$0xff]
    %v1217 = vld [vmem:[%s1212 + $0x20] sm:$0xff]
    %v1218 = vld [vmem:[%s1212 + $0x28] sm:$0xff]
    %v1219 = vld [vmem:[%s1212 + $0x30] sm:$0xff]
    %v1220 = vld [vmem:[%s1212 + $0x38] sm:$0xff]
    %v1221 = vld [vmem:[%s1212 + $0x40] sm:$0xff]
    %v1222 = vld [vmem:[%s1212 + $0x48] sm:$0xff]
    %v1223 = vld [vmem:[%s1212 + $0x50] sm:$0xff]
    %v1224 = vld [vmem:[%s1212 + $0x58] sm:$0xff]
    %v1225 = vld [vmem:[%s1212 + $0x60] sm:$0xff]
    %v1226 = vld [vmem:[%s1212 + $0x68] sm:$0xff]
    %v1227 = vld [vmem:[%s1212 + $0x70] sm:$0xff]
    %v1228 = vld [vmem:[%s1212 + $0x78] sm:$0xff]
    %v1229 = vld [vmem:[%s1212 + $0x80] sm:$0xff]
    %v1230 = vld [vmem:[%s1212 + $0x88] sm:$0xff]
    %v1231 = vld [vmem:[%s1212 + $0x90] sm:$0xff]
    %v1232 = vld [vmem:[%s1212 + $0x98] sm:$0xff]
    %v1233 = vld [vmem:[%s1212 + $0xa0] sm:$0xff]
    %v1234 = vld [vmem:[%s1212 + $0xa8] sm:$0xff]
    %v1235 = vld [vmem:[%s1212 + $0xb0] sm:$0xff]
    %v1236 = vld [vmem:[%s1212 + $0xb8] sm:$0xff]
    %v1237 = vld [vmem:[%s1212 + $0xc0] sm:$0xff]
    %v1238 = vld [vmem:[%s1212 + $0xc8] sm:$0xff]
    %v1239 = vld [vmem:[%s1212 + $0xd0] sm:$0xff]
    %v1240 = vld [vmem:[%s1212 + $0xd8] sm:$0xff]
    %v1241 = vld [vmem:[%s1212 + $0xe0] sm:$0xff]
    %v1242 = vld [vmem:[%s1212 + $0xe8] sm:$0xff]
    %v1243 = vld [vmem:[%s1212 + $0xf0] sm:$0xff]
    %v1244 = vld [vmem:[%s1212 + $0xf8] sm:$0xff]
    %v1277 = vunpack.c.l.b16 %v1213
    %v1278 = vunpack.c.h.b16 %v1213
    %v1279 = vunpack.c.l.b16 %v1214
    %v1280 = vunpack.c.h.b16 %v1214
    %v1281 = vunpack.c.l.b16 %v1215
    %v1282 = vunpack.c.h.b16 %v1215
    %v1283 = vunpack.c.l.b16 %v1216
    %v1284 = vunpack.c.h.b16 %v1216
    %v1285 = vunpack.c.l.b16 %v1217
    %v1286 = vunpack.c.h.b16 %v1217
    %v1287 = vunpack.c.l.b16 %v1218
    %v1288 = vunpack.c.h.b16 %v1218
    %v1289 = vunpack.c.l.b16 %v1219
    %v1290 = vunpack.c.h.b16 %v1219
    %v1291 = vunpack.c.l.b16 %v1220
    %v1292 = vunpack.c.h.b16 %v1220
    %v1293 = vunpack.c.l.b16 %v1221
    %v1294 = vunpack.c.h.b16 %v1221
    %v1295 = vunpack.c.l.b16 %v1222
    %v1296 = vunpack.c.h.b16 %v1222
    %v1297 = vunpack.c.l.b16 %v1223
    %v1298 = vunpack.c.h.b16 %v1223
    %v1299 = vunpack.c.l.b16 %v1224
    %v1300 = vunpack.c.h.b16 %v1224
    %v1301 = vunpack.c.l.b16 %v1225
    %v1302 = vunpack.c.h.b16 %v1225
    %v1303 = vunpack.c.l.b16 %v1226
    %v1304 = vunpack.c.h.b16 %v1226
    %v1305 = vunpack.c.l.b16 %v1227
    %v1306 = vunpack.c.h.b16 %v1227
    %v1307 = vunpack.c.l.b16 %v1228
    %v1308 = vunpack.c.h.b16 %v1228
    %v1309 = vunpack.c.l.b16 %v1229
    %v1310 = vunpack.c.h.b16 %v1229
    %v1311 = vunpack.c.l.b16 %v1230
    %v1312 = vunpack.c.h.b16 %v1230
    %v1313 = vunpack.c.l.b16 %v1231
    %v1314 = vunpack.c.h.b16 %v1231
    %v1315 = vunpack.c.l.b16 %v1232
    %v1316 = vunpack.c.h.b16 %v1232
    %v1317 = vunpack.c.l.b16 %v1233
    %v1318 = vunpack.c.h.b16 %v1233
    %v1319 = vunpack.c.l.b16 %v1234
    %v1320 = vunpack.c.h.b16 %v1234
    %v1321 = vunpack.c.l.b16 %v1235
    %v1322 = vunpack.c.h.b16 %v1235
    %v1323 = vunpack.c.l.b16 %v1236
    %v1324 = vunpack.c.h.b16 %v1236
    %v1325 = vunpack.c.l.b16 %v1237
    %v1326 = vunpack.c.h.b16 %v1237
    %v1327 = vunpack.c.l.b16 %v1238
    %v1328 = vunpack.c.h.b16 %v1238
    %v1329 = vunpack.c.l.b16 %v1239
    %v1330 = vunpack.c.h.b16 %v1239
    %v1331 = vunpack.c.l.b16 %v1240
    %v1332 = vunpack.c.h.b16 %v1240
    %v1333 = vunpack.c.l.b16 %v1241
    %v1334 = vunpack.c.h.b16 %v1241
    %v1335 = vunpack.c.l.b16 %v1242
    %v1336 = vunpack.c.h.b16 %v1242
    %v1337 = vunpack.c.l.b16 %v1243
    %v1338 = vunpack.c.h.b16 %v1243
    %v1339 = vunpack.c.l.b16 %v1244
    %v1340 = vunpack.c.h.b16 %v1244
    %v1341 = vpack.c.b16 %v1279, %v1277
    %v1342 = vpack.c.b16 %v1280, %v1278
    %v1343 = vpack.c.b16 %v1283, %v1281
    %v1344 = vpack.c.b16 %v1284, %v1282
    %v1345 = vpack.c.b16 %v1287, %v1285
    %v1346 = vpack.c.b16 %v1288, %v1286
    %v1347 = vpack.c.b16 %v1291, %v1289
    %v1348 = vpack.c.b16 %v1292, %v1290
    %v1349 = vpack.c.b16 %v1295, %v1293
    %v1350 = vpack.c.b16 %v1296, %v1294
    %v1351 = vpack.c.b16 %v1299, %v1297
    %v1352 = vpack.c.b16 %v1300, %v1298
    %v1353 = vpack.c.b16 %v1303, %v1301
    %v1354 = vpack.c.b16 %v1304, %v1302
    %v1355 = vpack.c.b16 %v1307, %v1305
    %v1356 = vpack.c.b16 %v1308, %v1306
    %v1357 = vpack.c.b16 %v1311, %v1309
    %v1358 = vpack.c.b16 %v1312, %v1310
    %v1359 = vpack.c.b16 %v1315, %v1313
    %v1360 = vpack.c.b16 %v1316, %v1314
    %v1361 = vpack.c.b16 %v1319, %v1317
    %v1362 = vpack.c.b16 %v1320, %v1318
    %v1363 = vpack.c.b16 %v1323, %v1321
    %v1364 = vpack.c.b16 %v1324, %v1322
    %v1365 = vpack.c.b16 %v1327, %v1325
    %v1366 = vpack.c.b16 %v1328, %v1326
    %v1367 = vpack.c.b16 %v1331, %v1329
    %v1368 = vpack.c.b16 %v1332, %v1330
    %v1369 = vpack.c.b16 %v1335, %v1333
    %v1370 = vpack.c.b16 %v1336, %v1334
    %v1371 = vpack.c.b16 %v1339, %v1337
    %v1372 = vpack.c.b16 %v1340, %v1338
    %1405 = vmatprep.subr.bf16.mxu0 %v1356
    %1406 = vmatpush1.bf16.msra.mxu0 %v1355
    %1407 = vmatprep.subr.bf16.mxu0 %v1354
    %1408 = vmatpush1.bf16.msra.mxu0 %v1353
    %1409 = vmatprep.subr.bf16.mxu0 %v1352
    %1410 = vmatpush1.bf16.msra.mxu0 %v1351
    %1411 = vmatprep.subr.bf16.mxu0 %v1350
    %1412 = vmatpush1.bf16.msra.mxu0 %v1349
    %1413 = vmatprep.subr.bf16.mxu0 %v1348
    %1414 = vmatpush1.bf16.msra.mxu0 %v1347
    %1415 = vmatprep.subr.bf16.mxu0 %v1346
    %1416 = vmatpush1.bf16.msra.mxu0 %v1345
    %1417 = vmatprep.subr.bf16.mxu0 %v1344
    %1418 = vmatpush1.bf16.msra.mxu0 %v1343
    %1419 = vmatprep.subr.bf16.mxu0 %v1342
    %1420 = vmatpush1.bf16.msra.mxu0 %v1341
    %1421 = vmatprep.subr.bf16.mxu0 %v1372
    %1422 = vmatpush2.bf16.msra.mxu0 %v1371
    %1423 = vmatprep.subr.bf16.mxu0 %v1370
    %1424 = vmatpush2.bf16.msra.mxu0 %v1369
    %1425 = vmatprep.subr.bf16.mxu0 %v1368
    %1426 = vmatpush2.bf16.msra.mxu0 %v1367
    %1427 = vmatprep.subr.bf16.mxu0 %v1366
    %1428 = vmatpush2.bf16.msra.mxu0 %v1365
    %1429 = vmatprep.subr.bf16.mxu0 %v1364
    %1430 = vmatpush2.bf16.msra.mxu0 %v1363
    %1431 = vmatprep.subr.bf16.mxu0 %v1362
    %1432 = vmatpush2.bf16.msra.mxu0 %v1361
    %1433 = vmatprep.subr.bf16.mxu0 %v1360
    %1434 = vmatpush2.bf16.msra.mxu0 %v1359
    %1435 = vmatprep.subr.bf16.mxu0 %v1358
    %1436 = vmatpush2.bf16.msra.mxu0 %v1357
    %1437 = vmatprep.mubr.bf16.mxu0 %v245
    %1438 = vmatmul.mubr.bf16.gmra.mxu0 %v244
    %v1439 = vpop.f32.mrf.mxu0
    %v1440 = vpop.f32.mrf.mxu0
    %v1441 = vadd.f32 0.0, %v1440
    %v1442 = vpop.f32.mrf.mxu0
    %v1443 = vpop.f32.mrf.mxu0
    %1444 = vdwg.mxu0
    %v1445 = vlaneseq
    %v1446 = vshrl.u32 %v1445, 7
    %v1447 = vsub.s32 4, %v1446
    %v1448 = vrot.slane %v246, %v1447
    %v1449 = vadd.f32 %v1441, %v1448
    %v1450 = vmax.f32 %v1449, 0.0
    %v1451 = vmax.f32 %v1211, %v1450
    %v1452 = vld [vmem:[#allocation7] sm:$0xff]
    %v1453 = vld [vmem:[#allocation7 + $0x8] sm:$0xff]
    %v1454 = vld [vmem:[#allocation7 + $0x10] sm:$0xff]
    %v1455 = vld [vmem:[#allocation7 + $0x18] sm:$0xff]
    %v1456 = vld [vmem:[#allocation7 + $0x20] sm:$0xff]
    %v1457 = vld [vmem:[#allocation7 + $0x28] sm:$0xff]
    %v1458 = vld [vmem:[#allocation7 + $0x30] sm:$0xff]
    %v1459 = vld [vmem:[#allocation7 + $0x38] sm:$0xff]
    %v1460 = vld [vmem:[#allocation7 + $0x40] sm:$0xff]
    %v1461 = vld [vmem:[#allocation7 + $0x48] sm:$0xff]
    %v1462 = vld [vmem:[#allocation7 + $0x50] sm:$0xff]
    %v1463 = vld [vmem:[#allocation7 + $0x58] sm:$0xff]
    %v1464 = vld [vmem:[#allocation7 + $0x60] sm:$0xff]
    %v1465 = vld [vmem:[#allocation7 + $0x68] sm:$0xff]
    %v1466 = vld [vmem:[#allocation7 + $0x70] sm:$0xff]
    %v1467 = vld [vmem:[#allocation7 + $0x78] sm:$0xff]
    %v1468 = vld [vmem:[#allocation7 + $0x80] sm:$0xff]
    %v1469 = vld [vmem:[#allocation7 + $0x88] sm:$0xff]
    %v1470 = vld [vmem:[#allocation7 + $0x90] sm:$0xff]
    %v1471 = vld [vmem:[#allocation7 + $0x98] sm:$0xff]
    %v1472 = vld [vmem:[#allocation7 + $0xa0] sm:$0xff]
    %v1473 = vld [vmem:[#allocation7 + $0xa8] sm:$0xff]
    %v1474 = vld [vmem:[#allocation7 + $0xb0] sm:$0xff]
    %v1475 = vld [vmem:[#allocation7 + $0xb8] sm:$0xff]
    %v1476 = vld [vmem:[#allocation7 + $0xc0] sm:$0xff]
    %v1477 = vld [vmem:[#allocation7 + $0xc8] sm:$0xff]
    %v1478 = vld [vmem:[#allocation7 + $0xd0] sm:$0xff]
    %v1479 = vld [vmem:[#allocation7 + $0xd8] sm:$0xff]
    %v1480 = vld [vmem:[#allocation7 + $0xe0] sm:$0xff]
    %v1481 = vld [vmem:[#allocation7 + $0xe8] sm:$0xff]
    %v1482 = vld [vmem:[#allocation7 + $0xf0] sm:$0xff]
    %v1483 = vld [vmem:[#allocation7 + $0xf8] sm:$0xff]
    %1484 = vmatprep.subr.mxu0 0.0
    %1485 = vmatpush1.msra.mxu0 %v1483
    %1486 = vmatprep.subr.mxu0 0.0
    %1487 = vmatpush1.msra.mxu0 %v1482
    %1488 = vmatprep.subr.mxu0 0.0
    %1489 = vmatpush1.msra.mxu0 %v1481
    %1490 = vmatprep.subr.mxu0 0.0
    %1491 = vmatpush1.msra.mxu0 %v1480
    %1492 = vmatprep.subr.mxu0 0.0
    %1493 = vmatpush1.msra.mxu0 %v1479
    %1494 = vmatprep.subr.mxu0 0.0
    %1495 = vmatpush1.msra.mxu0 %v1478
    %1496 = vmatprep.subr.mxu0 0.0
    %1497 = vmatpush1.msra.mxu0 %v1477
    %1498 = vmatprep.subr.mxu0 0.0
    %1499 = vmatpush1.msra.mxu0 %v1476
    %1500 = vmatprep.subr.mxu0 0.0
    %1501 = vmatpush1.msra.mxu0 %v1475
    %1502 = vmatprep.subr.mxu0 0.0
    %1503 = vmatpush1.msra.mxu0 %v1474
    %1504 = vmatprep.subr.mxu0 0.0
    %1505 = vmatpush1.msra.mxu0 %v1473
    %1506 = vmatprep.subr.mxu0 0.0
    %1507 = vmatpush1.msra.mxu0 %v1472
    %1508 = vmatprep.subr.mxu0 0.0
    %1509 = vmatpush1.msra.mxu0 %v1471
    %1510 = vmatprep.subr.mxu0 0.0
    %1511 = vmatpush1.msra.mxu0 %v1470
    %1512 = vmatprep.subr.mxu0 0.0
    %1513 = vmatpush1.msra.mxu0 %v1469
    %1514 = vmatprep.subr.mxu0 0.0
    %1515 = vmatpush1.msra.mxu0 %v1468
    %1516 = vmatprep.subr.mxu0 0.0
    %1517 = vmatpush2.msra.mxu0 0.0
    %1518 = vmatprep.subr.mxu0 0.0
    %1519 = vmatpush2.msra.mxu0 0.0
    %1520 = vmatprep.subr.mxu0 0.0
    %1521 = vmatpush2.msra.mxu0 0.0
    %1522 = vmatprep.subr.mxu0 0.0
    %1523 = vmatpush2.msra.mxu0 0.0
    %1524 = vmatprep.subr.mxu0 0.0
    %1525 = vmatpush2.msra.mxu0 0.0
    %1526 = vmatprep.subr.mxu0 0.0
    %1527 = vmatpush2.msra.mxu0 0.0
    %1528 = vmatprep.subr.mxu0 0.0
    %1529 = vmatpush2.msra.mxu0 0.0
    %1530 = vmatprep.subr.mxu0 0.0
    %1531 = vmatpush2.msra.mxu0 0.0
    %1532 = vmatprep.subr.mxu0 0.0
    %1533 = vmatpush2.msra.mxu0 0.0
    %1534 = vmatprep.subr.mxu0 0.0
    %1535 = vmatpush2.msra.mxu0 0.0
    %1536 = vmatprep.subr.mxu0 0.0
    %1537 = vmatpush2.msra.mxu0 0.0
    %1538 = vmatprep.subr.mxu0 0.0
    %1539 = vmatpush2.msra.mxu0 0.0
    %1540 = vmatprep.subr.mxu0 0.0
    %1541 = vmatpush2.msra.mxu0 0.0
    %1542 = vmatprep.subr.mxu0 0.0
    %1543 = vmatpush2.msra.mxu0 0.0
    %1544 = vmatprep.subr.mxu0 0.0
    %1545 = vmatpush2.msra.mxu0 0.0
    %1546 = vmatprep.subr.mxu0 0.0
    %1547 = vmatpush2.msra.mxu0 0.0
    %1548 = vmatprep.mubr.f32.mxu0 0.0
    %1549 = vmatmul.mubr.f32.gmra.mxu0 %v1451
    %v1550 = vpop.f32.mrf.mxu0
    %v1551 = vadd.f32 0.0, %v1550
    %v1552 = vpop.f32.mrf.mxu0
    %1553 = vdwg.mxu0
    %1554 = vmatprep.subr.mxu0 0.0
    %1555 = vmatpush1.msra.mxu0 %v1467
    %1556 = vmatprep.subr.mxu0 0.0
    %1557 = vmatpush1.msra.mxu0 %v1466
    %1558 = vmatprep.subr.mxu0 0.0
    %1559 = vmatpush1.msra.mxu0 %v1465
    %1560 = vmatprep.subr.mxu0 0.0
    %1561 = vmatpush1.msra.mxu0 %v1464
    %1562 = vmatprep.subr.mxu0 0.0
    %1563 = vmatpush1.msra.mxu0 %v1463
    %1564 = vmatprep.subr.mxu0 0.0
    %1565 = vmatpush1.msra.mxu0 %v1462
    %1566 = vmatprep.subr.mxu0 0.0
    %1567 = vmatpush1.msra.mxu0 %v1461
    %1568 = vmatprep.subr.mxu0 0.0
    %1569 = vmatpush1.msra.mxu0 %v1460
    %1570 = vmatprep.subr.mxu0 0.0
    %1571 = vmatpush1.msra.mxu0 %v1459
    %1572 = vmatprep.subr.mxu0 0.0
    %1573 = vmatpush1.msra.mxu0 %v1458
    %1574 = vmatprep.subr.mxu0 0.0
    %1575 = vmatpush1.msra.mxu0 %v1457
    %1576 = vmatprep.subr.mxu0 0.0
    %1577 = vmatpush1.msra.mxu0 %v1456
    %1578 = vmatprep.subr.mxu0 0.0
    %1579 = vmatpush1.msra.mxu0 %v1455
    %1580 = vmatprep.subr.mxu0 0.0
    %1581 = vmatpush1.msra.mxu0 %v1454
    %1582 = vmatprep.subr.mxu0 0.0
    %1583 = vmatpush1.msra.mxu0 %v1453
    %1584 = vmatprep.subr.mxu0 0.0
    %1585 = vmatpush1.msra.mxu0 %v1452
    %1586 = vmatprep.subr.mxu0 0.0
    %1587 = vmatpush2.msra.mxu0 0.0
    %1588 = vmatprep.subr.mxu0 0.0
    %1589 = vmatpush2.msra.mxu0 0.0
    %1590 = vmatprep.subr.mxu0 0.0
    %1591 = vmatpush2.msra.mxu0 0.0
    %1592 = vmatprep.subr.mxu0 0.0
    %1593 = vmatpush2.msra.mxu0 0.0
    %1594 = vmatprep.subr.mxu0 0.0
    %1595 = vmatpush2.msra.mxu0 0.0
    %1596 = vmatprep.subr.mxu0 0.0
    %1597 = vmatpush2.msra.mxu0 0.0
    %1598 = vmatprep.subr.mxu0 0.0
    %1599 = vmatpush2.msra.mxu0 0.0
    %1600 = vmatprep.subr.mxu0 0.0
    %1601 = vmatpush2.msra.mxu0 0.0
    %1602 = vmatprep.subr.mxu0 0.0
    %1603 = vmatpush2.msra.mxu0 0.0
    %1604 = vmatprep.subr.mxu0 0.0
    %1605 = vmatpush2.msra.mxu0 0.0
    %1606 = vmatprep.subr.mxu0 0.0
    %1607 = vmatpush2.msra.mxu0 0.0
    %1608 = vmatprep.subr.mxu0 0.0
    %1609 = vmatpush2.msra.mxu0 0.0
    %1610 = vmatprep.subr.mxu0 0.0
    %1611 = vmatpush2.msra.mxu0 0.0
    %1612 = vmatprep.subr.mxu0 0.0
    %1613 = vmatpush2.msra.mxu0 0.0
    %1614 = vmatprep.subr.mxu0 0.0
    %1615 = vmatpush2.msra.mxu0 0.0
    %1616 = vmatprep.subr.mxu0 0.0
    %1617 = vmatpush2.msra.mxu0 0.0
    %1618 = vmatprep.mubr.f32.mxu0 0.0
    %1619 = vmatmul.mubr.f32.gmra.mxu0 %v491
    %v1620 = vpop.f32.mrf.mxu0
    %v1621 = vadd.f32 %v1551, %v1620
    %v1622 = vpop.f32.mrf.mxu0
    %1623 = vdwg.mxu0
    %v1624 = vlaneseq
    %v1625 = vshrl.u32 %v1624, 7
    %v1626 = vsub.s32 6, %v1625
    %v1627 = vrot.slane %v246, %v1626
    %v1628 = vadd.f32 %v1621, %v1627
    %1629 = vst [vmem:[#allocation8] sm:$0x3] %v1628
    // Predicated region
    $region38: #{tpu_custom_call.1} parent=1 // pred_check
      _
    $region39: #{tpu_custom_call.1} parent=1 // pred_check_branch
      %1631 = sbr.rel (0) target = $region41
    $region40: #{tpu_custom_call.1} parent=1 // pred_region
      %s1633 = ssub.s32 32, 32
      %1634 = vsyncadd [#allocation4], %s1633
      %s1636 = sshll.u32 [#allocation8], 4
      %s1637 = int_to_ptr.vmem [resolvable:$true] %s1636
      %1639 = dma.vmem_to_hbm [thread:$0]  %s1637, 32, %s6, [#allocation4]
    $region41: #{tpu_custom_call.1} parent=1 // pred_fallthru
      _
    // Predicated region
    $region42: #{tpu_custom_call.1} parent=1 // pred_check
      _
    $region43: #{tpu_custom_call.1} parent=1 // pred_check_branch
      %1641 = sbr.rel (0) target = $region45
    $region44: #{tpu_custom_call.1} parent=1 // pred_region
      %1642 = dma.done [#allocation4], 32
    $region45: #{tpu_custom_call.1} parent=1 // pred_fallthru
      _
    %1643 = vsyncpa [#allocation3], 1
    %1644 = vsyncpa [#allocation6], 1
    %1645 = vsyncpa [#allocation4], 1

</llo_original>
